<compile_context>
chip_gen: v5e
topology: v5e:2x2
jax: 0.10.0
libtpu: 0.0.40
codegen_flags: <defaults>
</compile_context>

<pallas_src>
import math

import jax
import jax.numpy as jnp
from jax import lax
from jax.experimental import pallas as pl
from jax.experimental.pallas import tpu as pltpu

# ----------------------- synthetic (small) configuration -----------------------
N_CLS      = 4        # number of classnames
SEQ_LEN    = 8        # tokenized-prompt length (CLIP context length, shrunk)
D_MODEL    = 32       # text transformer width (cfg.TextEncoder.trans_width)
N_HEADS    = 2
HEAD_DIM   = D_MODEL // N_HEADS
N_LAYERS   = 2        # text transformer depth
N_CTX_TEXT = 2        # learnable text context tokens (N_CTX_TEXT)
EMBED_DIM  = 32       # joint embedding dim (text_projection / pc_projection out)
MLP_DIM    = 4 * D_MODEL

B_PTS      = 2        # point-cloud batch
N_POINTS   = 16       # points per cloud
PT_IN      = 3        # xyz
PT_HIDDEN  = 32
PC_FEAT    = 64       # point-encoder output dim (pc_feat_dims)

LN_EPS = 1e-5
_MX    = jnp.bfloat16     # MXU operand dtype (f32 accumulation)

_VMEM = pl.BlockSpec(memory_space=pltpu.MemorySpace.VMEM)
_SMEM = pl.BlockSpec(memory_space=pltpu.MemorySpace.SMEM)


def _layernorm(x, g, b):
    mu = jnp.mean(x, axis=-1, keepdims=True)
    var = jnp.mean(jnp.square(x - mu), axis=-1, keepdims=True)
    return (x - mu) * lax.rsqrt(var + LN_EPS) * g + b


def _mxdot(a, b):
    # a @ b on the MXU with bf16 operands / f32 accumulation (weights already bf16).
    return jnp.dot(a.astype(_MX), b.astype(_MX), preferred_element_type=jnp.float32)


def _mxdot_t(a, b):
    # a @ b.T (contract last dims of both) on the MXU, bf16 operands / f32 accumulation.
    return lax.dot_general(a.astype(_MX), b.astype(_MX),
                           (((1,), (1,)), ((), ())),
                           preferred_element_type=jnp.float32)


def _l2norm(x):
    # F.normalize-style: clamp the squared norm so zero vectors don't produce NaN/inf.
    return x * lax.rsqrt(jnp.maximum(jnp.sum(x * x, axis=-1, keepdims=True), 1e-12))


# ----------------------- the single fused forward kernel -----------------------
def _ulip_fused_kernel(
        # scalar
        scale_ref,                                        # SMEM (1,)  exp(logit_scale)
        # text branch
        x0_ref,                                           # (C*S, D)   prompts + pos_emb (flat)
        eot_ref,                                          # (C, C*S)   EOT one-hot (pool = matmul)
        mask_ref,                                         # (C*S, C*S) additive block-diag+causal
        lnf_g_ref, lnf_b_ref,                             # (1, D)
        tproj_ref,                                        # (D, E)     bf16
        # point branch
        pts_ref,                                          # (B*N, 3)
        ptw1_ref, ptb1_ref, ptw2_ref, ptb2_ref,           # point MLP (weights bf16, biases f32)
        pcproj_ref,                                       # (PC_FEAT, E) bf16
        # stacked transformer layer params (leading-axis indexed)
        ln1_g_ref, ln1_b_ref,                             # (L, 1, D)
        wqkv_ref,                                         # (L, D, 3*D)   bf16  [q|k|v], heads in lanes
        bqkv_ref,                                         # (L, 1, 3*D)
        wout_ref,                                         # (L, H*HD, D)  bf16
        bout_ref,                                         # (L, 1, D)
        ln2_g_ref, ln2_b_ref,                             # (L, 1, D)
        w1_ref, b1_ref,                                   # (L, D, MLP) bf16, (L, 1, MLP)
        w2_ref, b2_ref,                                   # (L, MLP, D) bf16, (L, 1, D)
        # output
        out_ref):                                         # (B, N_CLS)
    CS, D = x0_ref.shape

    x = x0_ref[...]                                       # (CS, D) token-major, already flat
    amask = mask_ref[...]                                 # additive mask, hoisted (0 / -1e9)
    inv_sqrt_d = 1.0 / math.sqrt(HEAD_DIM)

    # ---------------- text transformer (layers unrolled in-kernel) ----------------
    for l in range(N_LAYERS):                             # static unroll over depth
        # --- pre-LN multi-head causal self-attention ---
        xn = _layernorm(x, ln1_g_ref[l], ln1_b_ref[l])

        qkv = _mxdot(xn, wqkv_ref[l]) + bqkv_ref[l]       # ONE fused QKV matmul -> (CS, 3D)

        heads_out = []
        for h in range(N_HEADS):                          # static; per-head 2-D matmuls
            q0 = h * HEAD_DIM
            qh = qkv[:, q0:q0 + HEAD_DIM]                 # (CS, HD) static lane slices
            kh = qkv[:, D + q0:D + q0 + HEAD_DIM]
            vh = qkv[:, 2 * D + q0:2 * D + q0 + HEAD_DIM]

            s = _mxdot_t(qh, kh) * inv_sqrt_d + amask     # (CS, CS) all classes at once
            s = s - jnp.max(s, axis=-1, keepdims=True)
            p = jnp.exp(s)
            p = p * pl.reciprocal(jnp.sum(p, axis=-1, keepdims=True), approx=True)
            heads_out.append(_mxdot(p, vh))               # (CS, HD)

        o = jnp.concatenate(heads_out, axis=-1)           # (CS, H*HD) heads along lanes
        x = x + _mxdot(o, wout_ref[l]) + bout_ref[l]      # ONE fused output projection

        # --- MLP with QuickGELU (as in CLIP/ULIP) ---
        xn2 = _layernorm(x, ln2_g_ref[l], ln2_b_ref[l])
        hdn = _mxdot(xn2, w1_ref[l]) + b1_ref[l]
        hdn = hdn * jax.nn.sigmoid(1.702 * hdn)
        x = x + _mxdot(hdn, w2_ref[l]) + b2_ref[l]

    # ---------------- ln_final + EOT pooling (matmul) + text projection + L2 norm ------
    xn = _layernorm(x, lnf_g_ref[...], lnf_b_ref[...])    # (CS, D)
    pooled = _mxdot(eot_ref[...], xn)                     # (C, D)  x[arange(C), eot_idx]
    tfeat = _l2norm(_mxdot(pooled, tproj_ref[...]))       # (C, E)

    # ---------------- point encoder (shared MLP + max pool), no padding scratch --------
    h = jnp.maximum(_mxdot(pts_ref[...], ptw1_ref[...]) + ptb1_ref[...], 0.0)   # (B*N, H)
    h = jnp.maximum(_mxdot(h, ptw2_ref[...]) + ptb2_ref[...], 0.0)              # (B*N, PC_FEAT)
    pooled_pt = jnp.max(h.reshape(B_PTS, N_POINTS, PC_FEAT), axis=1)            # (B, PC_FEAT)

    # ---------------- pc_projection + L2 norm + scaled cosine logits ----------------
    pfeat = _l2norm(_mxdot(pooled_pt, pcproj_ref[...]))   # (B, E)
    logits = _mxdot_t(pfeat, tfeat)                       # (B, C)
    out_ref[...] = (scale_ref[0] * logits).astype(out_ref.dtype)


def custom_ulip_fused(scale, x0_2d, eot2d, attn_mask, lnf_g, lnf_b, text_proj,
                      pts2d, pt_w1, pt_b1, pt_w2, pt_b2, pc_proj, lp):
    args = (scale, x0_2d, eot2d, attn_mask, lnf_g, lnf_b, text_proj,
            pts2d, pt_w1, pt_b1, pt_w2, pt_b2, pc_proj,
            lp['ln1_g'], lp['ln1_b'], lp['wqkv'], lp['bqkv'], lp['wout'], lp['bout'],
            lp['ln2_g'], lp['ln2_b'], lp['w1'], lp['b1'], lp['w2'], lp['b2'])
    in_specs = [_SMEM] + [_VMEM] * (len(args) - 1)
    return pl.pallas_call(
        _ulip_fused_kernel,
        out_shape=jax.ShapeDtypeStruct((B_PTS, N_CLS), jnp.float32),
        in_specs=in_specs,
        out_specs=_VMEM,
    )(*args)


# ----------------------- deterministic parameter construction -----------------------
def init_params(key):
    keys = jax.random.split(key, 32)
    it = iter(keys)

    def nrm(shape, std=0.02, dtype=jnp.float32):
        return (jax.random.normal(next(it), shape, jnp.float32) * std).astype(dtype)

    params = {
        # VLPromptLearner buffers / parameters
        'text_ctx': nrm((N_CTX_TEXT, D_MODEL)),                     # nn.Parameter, std=0.02
        'token_prefix': nrm((N_CLS, 1, D_MODEL)),                   # SOT embedding
        'token_suffix': nrm((N_CLS, SEQ_LEN - 1 - N_CTX_TEXT, D_MODEL)),
        # TextEncoder
        'pos_emb': nrm((SEQ_LEN, D_MODEL), 0.01),
        'lnf_g': jnp.ones((1, D_MODEL), jnp.float32),
        'lnf_b': jnp.zeros((1, D_MODEL), jnp.float32),
        'text_proj': nrm((D_MODEL, EMBED_DIM), dtype=_MX),          # bf16 MXU weight
        # Point encoder (synthetic PointNet-lite) + projection — bf16 MXU weights
        'pt_w1': nrm((PT_IN, PT_HIDDEN), 0.1, dtype=_MX),
        'pt_b1': jnp.zeros((1, PT_HIDDEN), jnp.float32),
        'pt_w2': nrm((PT_HIDDEN, PC_FEAT), 0.1, dtype=_MX),
        'pt_b2': jnp.zeros((1, PC_FEAT), jnp.float32),
        'pc_proj': nrm((PC_FEAT, EMBED_DIM), dtype=_MX),
        'logit_scale': jnp.array(math.log(1.0 / 0.07), jnp.float32),
    }
    # Transformer layer params, stacked over layers; QKV / out-proj pre-packed for fused
    # single-matmul use (heads contiguous along lanes), matmul weights stored bf16.
    params['layers'] = {
        'ln1_g': jnp.ones((N_LAYERS, 1, D_MODEL), jnp.float32),
        'ln1_b': jnp.zeros((N_LAYERS, 1, D_MODEL), jnp.float32),
        'wqkv': nrm((N_LAYERS, D_MODEL, 3 * D_MODEL), dtype=_MX),    # [q | k | v], heads packed
        'bqkv': jnp.zeros((N_LAYERS, 1, 3 * D_MODEL), jnp.float32),
        'wout': nrm((N_LAYERS, N_HEADS * HEAD_DIM, D_MODEL), dtype=_MX),
        'bout': jnp.zeros((N_LAYERS, 1, D_MODEL), jnp.float32),
        'ln2_g': jnp.ones((N_LAYERS, 1, D_MODEL), jnp.float32),
        'ln2_b': jnp.zeros((N_LAYERS, 1, D_MODEL), jnp.float32),
        'w1': nrm((N_LAYERS, D_MODEL, MLP_DIM), dtype=_MX),
        'b1': jnp.zeros((N_LAYERS, 1, MLP_DIM), jnp.float32),
        'w2': nrm((N_LAYERS, MLP_DIM, D_MODEL), dtype=_MX),
        'b2': jnp.zeros((N_LAYERS, 1, D_MODEL), jnp.float32),
    }
    return params


def make_tokenized_prompts():
    # Synthetic clip.tokenize output: SOT, a few word tokens, EOT (max token id),
    # zero padding. argmax(-1) recovers the EOT position exactly as in CLIP/ULIP.
    eot_pos = jnp.array([4, 5, 6, 5], dtype=jnp.int32)
    toks = jnp.zeros((N_CLS, SEQ_LEN), jnp.int32)
    toks = toks.at[:, 0].set(49406)                                 # SOT
    toks = toks.at[:, 1:4].set(jnp.arange(1, 4)[None] + 100)        # word tokens
    toks = toks.at[jnp.arange(N_CLS), eot_pos].set(49407)           # EOT
    return toks


# ----------------------- full CustomULIP forward -----------------------
def custom_ulip_forward(params, pts, tokenized_prompts, label=None, training=False):
    # --- VLPromptLearner.forward: prompts = cat([prefix, ctx, suffix], dim=1) (tiny glue) ---
    ctx = jnp.broadcast_to(params['text_ctx'][None], (N_CLS, N_CTX_TEXT, D_MODEL))
    prompts = jnp.concatenate([params['token_prefix'], ctx, params['token_suffix']], axis=1)
    x0 = (prompts + params['pos_emb'][None]).astype(jnp.float32)    # (n_cls, seq, d)
    x0_2d = x0.reshape(N_CLS * SEQ_LEN, D_MODEL)                    # free wrapper-side reshape

    # EOT position as a (C, C*S) one-hot: pooling becomes a single MXU matmul in-kernel.
    eot_idx = jnp.argmax(tokenized_prompts, axis=-1)                 # (n_cls,)
    eot2d = jax.nn.one_hot(jnp.arange(N_CLS) * SEQ_LEN + eot_idx,
                           N_CLS * SEQ_LEN, dtype=jnp.float32)

    # Additive attention mask, built ONCE: block-diagonal over classes + causal within class.
    cls_id = jnp.repeat(jnp.arange(N_CLS), SEQ_LEN)
    seq_id = jnp.tile(jnp.arange(SEQ_LEN), N_CLS)
    allowed = (cls_id[:, None] == cls_id[None, :]) & (seq_id[None, :] <= seq_id[:, None])
    attn_mask = jnp.where(allowed, 0.0, -1e9).astype(jnp.float32)    # (C*S, C*S)

    scale = jnp.exp(params['logit_scale']).reshape(1)                # logit_scale.exp()
    pts2d = pts.astype(jnp.float32).reshape(B_PTS * N_POINTS, PT_IN)  # flat xyz, no in-kernel pad

    logits = custom_ulip_fused(
        scale, x0_2d, eot2d, attn_mask, params['lnf_g'], params['lnf_b'], params['text_proj'],
        pts2d, params['pt_w1'], params['pt_b1'], params['pt_w2'], params['pt_b2'],
        params['pc_proj'], params['layers'])

    if training and label is not None:
        # F.cross_entropy(logits, label) — tiny reduction, kept as plain-JAX glue.
        logp = jax.nn.log_softmax(logits, axis=-1)
        return -jnp.mean(jnp.take_along_axis(logp, label[:, None], axis=1))
    return logits


if __name__ == "__main__":
    key = jax.random.PRNGKey(0)
    kp, kx = jax.random.split(key)
    params = init_params(kp)
    pts = jax.random.normal(kx, (B_PTS, N_POINTS, PT_IN), jnp.float32)
    tokenized_prompts = make_tokenized_prompts()

    fwd = jax.jit(custom_ulip_forward)
    logits = fwd(params, pts, tokenized_prompts)
    jax.block_until_ready(logits)
    assert logits.shape == (B_PTS, N_CLS) and logits.dtype == jnp.float32
    assert bool(jnp.all(jnp.isfinite(logits)))
    print("KERNEL_OK")
</pallas_src>

<mosaic_0001>
module attributes {stable_mosaic.version = 11 : i64} {
  func.func @_ulip_fused_kernel(%arg0: memref<1xf32, #tpu.memory_space<smem>>, %arg1: memref<32x32xf32, #tpu.memory_space<vmem>>, %arg2: memref<4x32xf32, #tpu.memory_space<vmem>>, %arg3: memref<32x32xf32, #tpu.memory_space<vmem>>, %arg4: memref<1x32xf32, #tpu.memory_space<vmem>>, %arg5: memref<1x32xf32, #tpu.memory_space<vmem>>, %arg6: memref<32x32xbf16, #tpu.memory_space<vmem>>, %arg7: memref<32x3xf32, #tpu.memory_space<vmem>>, %arg8: memref<3x32xbf16, #tpu.memory_space<vmem>>, %arg9: memref<1x32xf32, #tpu.memory_space<vmem>>, %arg10: memref<32x64xbf16, #tpu.memory_space<vmem>>, %arg11: memref<1x64xf32, #tpu.memory_space<vmem>>, %arg12: memref<64x32xbf16, #tpu.memory_space<vmem>>, %arg13: memref<2x1x32xf32, #tpu.memory_space<vmem>>, %arg14: memref<2x1x32xf32, #tpu.memory_space<vmem>>, %arg15: memref<2x32x96xbf16, #tpu.memory_space<vmem>>, %arg16: memref<2x1x96xf32, #tpu.memory_space<vmem>>, %arg17: memref<2x32x32xbf16, #tpu.memory_space<vmem>>, %arg18: memref<2x1x32xf32, #tpu.memory_space<vmem>>, %arg19: memref<2x1x32xf32, #tpu.memory_space<vmem>>, %arg20: memref<2x1x32xf32, #tpu.memory_space<vmem>>, %arg21: memref<2x32x128xbf16, #tpu.memory_space<vmem>>, %arg22: memref<2x1x128xf32, #tpu.memory_space<vmem>>, %arg23: memref<2x128x32xbf16, #tpu.memory_space<vmem>>, %arg24: memref<2x1x32xf32, #tpu.memory_space<vmem>>, %arg25: memref<2x4xf32, #tpu.memory_space<vmem>>) attributes {dimension_semantics = [], scalar_prefetch = 0 : i64, scratch_operands = 0 : i64, tpu.core_type = #tpu.core_type<tc>} {
    %c0 = arith.constant 0 : index
    %c0_0 = arith.constant 0 : index
    %0 = vector.load %arg1[%c0, %c0_0] : memref<32x32xf32, #tpu.memory_space<vmem>>, vector<32x32xf32>
    %c0_1 = arith.constant 0 : index
    %c0_2 = arith.constant 0 : index
    %1 = vector.load %arg3[%c0_1, %c0_2] : memref<32x32xf32, #tpu.memory_space<vmem>>, vector<32x32xf32>
    %c0_3 = arith.constant 0 : index
    %c0_4 = arith.constant 0 : index
    %c0_5 = arith.constant 0 : index
    %2 = vector.load %arg13[%c0_3, %c0_4, %c0_5] : memref<2x1x32xf32, #tpu.memory_space<vmem>>, vector<1x1x32xf32>
    %3 = vector.shape_cast %2 : vector<1x1x32xf32> to vector<1x32xf32>
    %c0_6 = arith.constant 0 : index
    %c0_7 = arith.constant 0 : index
    %c0_8 = arith.constant 0 : index
    %4 = vector.load %arg14[%c0_6, %c0_7, %c0_8] : memref<2x1x32xf32, #tpu.memory_space<vmem>>, vector<1x1x32xf32>
    %5 = vector.shape_cast %4 : vector<1x1x32xf32> to vector<1x32xf32>
    %cst = arith.constant dense<0.000000e+00> : vector<32xf32>
    %6 = vector.multi_reduction <add>, %0, %cst [1] : vector<32x32xf32> to vector<32xf32>
    %7 = vector.shape_cast %6 : vector<32xf32> to vector<32x1xf32>
    %cst_9 = arith.constant 3.200000e+01 : f32
    %8 = vector.broadcast %cst_9 : f32 to vector<32x1xf32>
    %9 = arith.divf %7, %8 : vector<32x1xf32>
    %10 = vector.broadcast %9 : vector<32x1xf32> to vector<32x32xf32>
    %11 = arith.subf %0, %10 : vector<32x32xf32>
    %12 = arith.mulf %11, %11 : vector<32x32xf32>
    %cst_10 = arith.constant dense<0.000000e+00> : vector<32xf32>
    %13 = vector.multi_reduction <add>, %12, %cst_10 [1] : vector<32x32xf32> to vector<32xf32>
    %14 = vector.shape_cast %13 : vector<32xf32> to vector<32x1xf32>
    %cst_11 = arith.constant 3.200000e+01 : f32
    %15 = vector.broadcast %cst_11 : f32 to vector<32x1xf32>
    %16 = arith.divf %14, %15 : vector<32x1xf32>
    %17 = vector.broadcast %9 : vector<32x1xf32> to vector<32x32xf32>
    %18 = arith.subf %0, %17 : vector<32x32xf32>
    %cst_12 = arith.constant 9.99999974E-6 : f32
    %19 = vector.broadcast %cst_12 : f32 to vector<32x1xf32>
    %20 = arith.addf %16, %19 : vector<32x1xf32>
    %21 = math.rsqrt %20 : vector<32x1xf32>
    %22 = vector.broadcast %21 : vector<32x1xf32> to vector<32x32xf32>
    %23 = arith.mulf %18, %22 : vector<32x32xf32>
    %24 = vector.broadcast %3 : vector<1x32xf32> to vector<32x32xf32>
    %25 = arith.mulf %23, %24 : vector<32x32xf32>
    %26 = vector.broadcast %5 : vector<1x32xf32> to vector<32x32xf32>
    %27 = arith.addf %25, %26 : vector<32x32xf32>
    %c0_13 = arith.constant 0 : index
    %c0_14 = arith.constant 0 : index
    %c0_15 = arith.constant 0 : index
    %28 = vector.load %arg15[%c0_13, %c0_14, %c0_15] : memref<2x32x96xbf16, #tpu.memory_space<vmem>>, vector<1x32x96xbf16>
    %29 = vector.shape_cast %28 : vector<1x32x96xbf16> to vector<32x96xbf16>
    %30 = arith.truncf %27 : vector<32x32xf32> to vector<32x32xbf16>
    %cst_16 = arith.constant dense<0.000000e+00> : vector<32x96xf32>
    %31 = tpu.matmul %30, %29, %cst_16 {dimension_numbers = #tpu.dot_dimension_numbers<[1], [0], [0], [1], [0, 0, 1, 1], [], []>} : vector<32x32xbf16>, vector<32x96xbf16>, vector<32x96xf32> -> vector<32x96xf32>
    %c0_17 = arith.constant 0 : index
    %c0_18 = arith.constant 0 : index
    %c0_19 = arith.constant 0 : index
    %32 = vector.load %arg16[%c0_17, %c0_18, %c0_19] : memref<2x1x96xf32, #tpu.memory_space<vmem>>, vector<1x1x96xf32>
    %33 = vector.shape_cast %32 : vector<1x1x96xf32> to vector<1x96xf32>
    %34 = vector.broadcast %33 : vector<1x96xf32> to vector<32x96xf32>
    %35 = arith.addf %31, %34 : vector<32x96xf32>
    %36 = vector.extract_strided_slice %35 {offsets = [0, 0], sizes = [32, 16], strides = [1, 1]} : vector<32x96xf32> to vector<32x16xf32>
    %37 = vector.extract_strided_slice %35 {offsets = [0, 32], sizes = [32, 16], strides = [1, 1]} : vector<32x96xf32> to vector<32x16xf32>
    %38 = vector.extract_strided_slice %35 {offsets = [0, 64], sizes = [32, 16], strides = [1, 1]} : vector<32x96xf32> to vector<32x16xf32>
    %39 = arith.truncf %36 : vector<32x16xf32> to vector<32x16xbf16>
    %40 = arith.truncf %37 : vector<32x16xf32> to vector<32x16xbf16>
    %cst_20 = arith.constant dense<0.000000e+00> : vector<32x32xf32>
    %41 = tpu.matmul %39, %40, %cst_20 {dimension_numbers = #tpu.dot_dimension_numbers<[1], [1], [0], [0], [0, 0, 1, 0], [], []>} : vector<32x16xbf16>, vector<32x16xbf16>, vector<32x32xf32> -> vector<32x32xf32>
    %cst_21 = arith.constant 2.500000e-01 : f32
    %42 = vector.broadcast %cst_21 : f32 to vector<32x32xf32>
    %43 = arith.mulf %41, %42 : vector<32x32xf32>
    %44 = arith.addf %43, %1 : vector<32x32xf32>
    %cst_22 = arith.constant dense<0xFF800000> : vector<32xf32>
    %45 = vector.multi_reduction <maximumf>, %44, %cst_22 [1] : vector<32x32xf32> to vector<32xf32>
    %46 = vector.shape_cast %45 : vector<32xf32> to vector<32x1xf32>
    %47 = vector.broadcast %46 : vector<32x1xf32> to vector<32x32xf32>
    %48 = arith.subf %44, %47 : vector<32x32xf32>
    %49 = math.exp %48 : vector<32x32xf32>
    %cst_23 = arith.constant dense<0.000000e+00> : vector<32xf32>
    %50 = vector.multi_reduction <add>, %49, %cst_23 [1] : vector<32x32xf32> to vector<32xf32>
    %51 = vector.shape_cast %50 : vector<32xf32> to vector<32x1xf32>
    %52 = tpu.reciprocal %51 {approx = true} : vector<32x1xf32> -> vector<32x1xf32>
    %53 = vector.broadcast %52 : vector<32x1xf32> to vector<32x32xf32>
    %54 = arith.mulf %49, %53 : vector<32x32xf32>
    %55 = arith.truncf %54 : vector<32x32xf32> to vector<32x32xbf16>
    %56 = arith.truncf %38 : vector<32x16xf32> to vector<32x16xbf16>
    %cst_24 = arith.constant dense<0.000000e+00> : vector<32x16xf32>
    %57 = tpu.matmul %55, %56, %cst_24 {dimension_numbers = #tpu.dot_dimension_numbers<[1], [0], [0], [1], [0, 0, 1, 1], [], []>} : vector<32x32xbf16>, vector<32x16xbf16>, vector<32x16xf32> -> vector<32x16xf32>
    %58 = vector.extract_strided_slice %35 {offsets = [0, 16], sizes = [32, 16], strides = [1, 1]} : vector<32x96xf32> to vector<32x16xf32>
    %59 = vector.extract_strided_slice %35 {offsets = [0, 48], sizes = [32, 16], strides = [1, 1]} : vector<32x96xf32> to vector<32x16xf32>
    %60 = vector.extract_strided_slice %35 {offsets = [0, 80], sizes = [32, 16], strides = [1, 1]} : vector<32x96xf32> to vector<32x16xf32>
    %61 = arith.truncf %58 : vector<32x16xf32> to vector<32x16xbf16>
    %62 = arith.truncf %59 : vector<32x16xf32> to vector<32x16xbf16>
    %cst_25 = arith.constant dense<0.000000e+00> : vector<32x32xf32>
    %63 = tpu.matmul %61, %62, %cst_25 {dimension_numbers = #tpu.dot_dimension_numbers<[1], [1], [0], [0], [0, 0, 1, 0], [], []>} : vector<32x16xbf16>, vector<32x16xbf16>, vector<32x32xf32> -> vector<32x32xf32>
    %cst_26 = arith.constant 2.500000e-01 : f32
    %64 = vector.broadcast %cst_26 : f32 to vector<32x32xf32>
    %65 = arith.mulf %63, %64 : vector<32x32xf32>
    %66 = arith.addf %65, %1 : vector<32x32xf32>
    %cst_27 = arith.constant dense<0xFF800000> : vector<32xf32>
    %67 = vector.multi_reduction <maximumf>, %66, %cst_27 [1] : vector<32x32xf32> to vector<32xf32>
    %68 = vector.shape_cast %67 : vector<32xf32> to vector<32x1xf32>
    %69 = vector.broadcast %68 : vector<32x1xf32> to vector<32x32xf32>
    %70 = arith.subf %66, %69 : vector<32x32xf32>
    %71 = math.exp %70 : vector<32x32xf32>
    %cst_28 = arith.constant dense<0.000000e+00> : vector<32xf32>
    %72 = vector.multi_reduction <add>, %71, %cst_28 [1] : vector<32x32xf32> to vector<32xf32>
    %73 = vector.shape_cast %72 : vector<32xf32> to vector<32x1xf32>
    %74 = tpu.reciprocal %73 {approx = true} : vector<32x1xf32> -> vector<32x1xf32>
    %75 = vector.broadcast %74 : vector<32x1xf32> to vector<32x32xf32>
    %76 = arith.mulf %71, %75 : vector<32x32xf32>
    %77 = arith.truncf %76 : vector<32x32xf32> to vector<32x32xbf16>
    %78 = arith.truncf %60 : vector<32x16xf32> to vector<32x16xbf16>
    %cst_29 = arith.constant dense<0.000000e+00> : vector<32x16xf32>
    %79 = tpu.matmul %77, %78, %cst_29 {dimension_numbers = #tpu.dot_dimension_numbers<[1], [0], [0], [1], [0, 0, 1, 1], [], []>} : vector<32x32xbf16>, vector<32x16xbf16>, vector<32x16xf32> -> vector<32x16xf32>
    %80 = tpu.concatenate %57, %79 in 1 : vector<32x16xf32>, vector<32x16xf32> -> vector<32x32xf32>
    %c0_30 = arith.constant 0 : index
    %c0_31 = arith.constant 0 : index
    %c0_32 = arith.constant 0 : index
    %81 = vector.load %arg17[%c0_30, %c0_31, %c0_32] : memref<2x32x32xbf16, #tpu.memory_space<vmem>>, vector<1x32x32xbf16>
    %82 = vector.shape_cast %81 : vector<1x32x32xbf16> to vector<32x32xbf16>
    %83 = arith.truncf %80 : vector<32x32xf32> to vector<32x32xbf16>
    %cst_33 = arith.constant dense<0.000000e+00> : vector<32x32xf32>
    %84 = tpu.matmul %83, %82, %cst_33 {dimension_numbers = #tpu.dot_dimension_numbers<[1], [0], [0], [1], [0, 0, 1, 1], [], []>} : vector<32x32xbf16>, vector<32x32xbf16>, vector<32x32xf32> -> vector<32x32xf32>
    %85 = arith.addf %0, %84 : vector<32x32xf32>
    %c0_34 = arith.constant 0 : index
    %c0_35 = arith.constant 0 : index
    %c0_36 = arith.constant 0 : index
    %86 = vector.load %arg18[%c0_34, %c0_35, %c0_36] : memref<2x1x32xf32, #tpu.memory_space<vmem>>, vector<1x1x32xf32>
    %87 = vector.shape_cast %86 : vector<1x1x32xf32> to vector<1x32xf32>
    %88 = vector.broadcast %87 : vector<1x32xf32> to vector<32x32xf32>
    %89 = arith.addf %85, %88 : vector<32x32xf32>
    %c0_37 = arith.constant 0 : index
    %c0_38 = arith.constant 0 : index
    %c0_39 = arith.constant 0 : index
    %90 = vector.load %arg19[%c0_37, %c0_38, %c0_39] : memref<2x1x32xf32, #tpu.memory_space<vmem>>, vector<1x1x32xf32>
    %91 = vector.shape_cast %90 : vector<1x1x32xf32> to vector<1x32xf32>
    %c0_40 = arith.constant 0 : index
    %c0_41 = arith.constant 0 : index
    %c0_42 = arith.constant 0 : index
    %92 = vector.load %arg20[%c0_40, %c0_41, %c0_42] : memref<2x1x32xf32, #tpu.memory_space<vmem>>, vector<1x1x32xf32>
    %93 = vector.shape_cast %92 : vector<1x1x32xf32> to vector<1x32xf32>
    %cst_43 = arith.constant dense<0.000000e+00> : vector<32xf32>
    %94 = vector.multi_reduction <add>, %89, %cst_43 [1] : vector<32x32xf32> to vector<32xf32>
    %95 = vector.shape_cast %94 : vector<32xf32> to vector<32x1xf32>
    %cst_44 = arith.constant 3.200000e+01 : f32
    %96 = vector.broadcast %cst_44 : f32 to vector<32x1xf32>
    %97 = arith.divf %95, %96 : vector<32x1xf32>
    %98 = vector.broadcast %97 : vector<32x1xf32> to vector<32x32xf32>
    %99 = arith.subf %89, %98 : vector<32x32xf32>
    %100 = arith.mulf %99, %99 : vector<32x32xf32>
    %cst_45 = arith.constant dense<0.000000e+00> : vector<32xf32>
    %101 = vector.multi_reduction <add>, %100, %cst_45 [1] : vector<32x32xf32> to vector<32xf32>
    %102 = vector.shape_cast %101 : vector<32xf32> to vector<32x1xf32>
    %cst_46 = arith.constant 3.200000e+01 : f32
    %103 = vector.broadcast %cst_46 : f32 to vector<32x1xf32>
    %104 = arith.divf %102, %103 : vector<32x1xf32>
    %105 = vector.broadcast %97 : vector<32x1xf32> to vector<32x32xf32>
    %106 = arith.subf %89, %105 : vector<32x32xf32>
    %cst_47 = arith.constant 9.99999974E-6 : f32
    %107 = vector.broadcast %cst_47 : f32 to vector<32x1xf32>
    %108 = arith.addf %104, %107 : vector<32x1xf32>
    %109 = math.rsqrt %108 : vector<32x1xf32>
    %110 = vector.broadcast %109 : vector<32x1xf32> to vector<32x32xf32>
    %111 = arith.mulf %106, %110 : vector<32x32xf32>
    %112 = vector.broadcast %91 : vector<1x32xf32> to vector<32x32xf32>
    %113 = arith.mulf %111, %112 : vector<32x32xf32>
    %114 = vector.broadcast %93 : vector<1x32xf32> to vector<32x32xf32>
    %115 = arith.addf %113, %114 : vector<32x32xf32>
    %c0_48 = arith.constant 0 : index
    %c0_49 = arith.constant 0 : index
    %c0_50 = arith.constant 0 : index
    %116 = vector.load %arg21[%c0_48, %c0_49, %c0_50] : memref<2x32x128xbf16, #tpu.memory_space<vmem>>, vector<1x32x128xbf16>
    %117 = vector.shape_cast %116 : vector<1x32x128xbf16> to vector<32x128xbf16>
    %118 = arith.truncf %115 : vector<32x32xf32> to vector<32x32xbf16>
    %cst_51 = arith.constant dense<0.000000e+00> : vector<32x128xf32>
    %119 = tpu.matmul %118, %117, %cst_51 {dimension_numbers = #tpu.dot_dimension_numbers<[1], [0], [0], [1], [0, 0, 1, 1], [], []>} : vector<32x32xbf16>, vector<32x128xbf16>, vector<32x128xf32> -> vector<32x128xf32>
    %c0_52 = arith.constant 0 : index
    %c0_53 = arith.constant 0 : index
    %c0_54 = arith.constant 0 : index
    %120 = vector.load %arg22[%c0_52, %c0_53, %c0_54] : memref<2x1x128xf32, #tpu.memory_space<vmem>>, vector<1x1x128xf32>
    %121 = vector.shape_cast %120 : vector<1x1x128xf32> to vector<1x128xf32>
    %122 = vector.broadcast %121 : vector<1x128xf32> to vector<32x128xf32>
    %123 = arith.addf %119, %122 : vector<32x128xf32>
    %cst_55 = arith.constant 1.702000e+00 : f32
    %124 = vector.broadcast %cst_55 : f32 to vector<32x128xf32>
    %125 = arith.mulf %124, %123 : vector<32x128xf32>
    %126 = arith.negf %125 : vector<32x128xf32>
    %127 = math.exp %126 : vector<32x128xf32>
    %cst_56 = arith.constant 1.000000e+00 : f32
    %128 = vector.broadcast %cst_56 : f32 to vector<32x128xf32>
    %129 = arith.addf %128, %127 : vector<32x128xf32>
    %130 = arith.divf %128, %129 : vector<32x128xf32>
    %131 = arith.mulf %123, %130 : vector<32x128xf32>
    %c0_57 = arith.constant 0 : index
    %c0_58 = arith.constant 0 : index
    %c0_59 = arith.constant 0 : index
    %132 = vector.load %arg23[%c0_57, %c0_58, %c0_59] : memref<2x128x32xbf16, #tpu.memory_space<vmem>>, vector<1x128x32xbf16>
    %133 = vector.shape_cast %132 : vector<1x128x32xbf16> to vector<128x32xbf16>
    %134 = arith.truncf %131 : vector<32x128xf32> to vector<32x128xbf16>
    %cst_60 = arith.constant dense<0.000000e+00> : vector<32x32xf32>
    %135 = tpu.matmul %134, %133, %cst_60 {dimension_numbers = #tpu.dot_dimension_numbers<[1], [0], [0], [1], [0, 0, 1, 1], [], []>} : vector<32x128xbf16>, vector<128x32xbf16>, vector<32x32xf32> -> vector<32x32xf32>
    %136 = arith.addf %89, %135 : vector<32x32xf32>
    %c0_61 = arith.constant 0 : index
    %c0_62 = arith.constant 0 : index
    %c0_63 = arith.constant 0 : index
    %137 = vector.load %arg24[%c0_61, %c0_62, %c0_63] : memref<2x1x32xf32, #tpu.memory_space<vmem>>, vector<1x1x32xf32>
    %138 = vector.shape_cast %137 : vector<1x1x32xf32> to vector<1x32xf32>
    %139 = vector.broadcast %138 : vector<1x32xf32> to vector<32x32xf32>
    %140 = arith.addf %136, %139 : vector<32x32xf32>
    %c1 = arith.constant 1 : index
    %c0_64 = arith.constant 0 : index
    %c0_65 = arith.constant 0 : index
    %141 = vector.load %arg13[%c1, %c0_64, %c0_65] : memref<2x1x32xf32, #tpu.memory_space<vmem>>, vector<1x1x32xf32>
    %142 = vector.shape_cast %141 : vector<1x1x32xf32> to vector<1x32xf32>
    %c1_66 = arith.constant 1 : index
    %c0_67 = arith.constant 0 : index
    %c0_68 = arith.constant 0 : index
    %143 = vector.load %arg14[%c1_66, %c0_67, %c0_68] : memref<2x1x32xf32, #tpu.memory_space<vmem>>, vector<1x1x32xf32>
    %144 = vector.shape_cast %143 : vector<1x1x32xf32> to vector<1x32xf32>
    %cst_69 = arith.constant dense<0.000000e+00> : vector<32xf32>
    %145 = vector.multi_reduction <add>, %140, %cst_69 [1] : vector<32x32xf32> to vector<32xf32>
    %146 = vector.shape_cast %145 : vector<32xf32> to vector<32x1xf32>
    %cst_70 = arith.constant 3.200000e+01 : f32
    %147 = vector.broadcast %cst_70 : f32 to vector<32x1xf32>
    %148 = arith.divf %146, %147 : vector<32x1xf32>
    %149 = vector.broadcast %148 : vector<32x1xf32> to vector<32x32xf32>
    %150 = arith.subf %140, %149 : vector<32x32xf32>
    %151 = arith.mulf %150, %150 : vector<32x32xf32>
    %cst_71 = arith.constant dense<0.000000e+00> : vector<32xf32>
    %152 = vector.multi_reduction <add>, %151, %cst_71 [1] : vector<32x32xf32> to vector<32xf32>
    %153 = vector.shape_cast %152 : vector<32xf32> to vector<32x1xf32>
    %cst_72 = arith.constant 3.200000e+01 : f32
    %154 = vector.broadcast %cst_72 : f32 to vector<32x1xf32>
    %155 = arith.divf %153, %154 : vector<32x1xf32>
    %156 = vector.broadcast %148 : vector<32x1xf32> to vector<32x32xf32>
    %157 = arith.subf %140, %156 : vector<32x32xf32>
    %cst_73 = arith.constant 9.99999974E-6 : f32
    %158 = vector.broadcast %cst_73 : f32 to vector<32x1xf32>
    %159 = arith.addf %155, %158 : vector<32x1xf32>
    %160 = math.rsqrt %159 : vector<32x1xf32>
    %161 = vector.broadcast %160 : vector<32x1xf32> to vector<32x32xf32>
    %162 = arith.mulf %157, %161 : vector<32x32xf32>
    %163 = vector.broadcast %142 : vector<1x32xf32> to vector<32x32xf32>
    %164 = arith.mulf %162, %163 : vector<32x32xf32>
    %165 = vector.broadcast %144 : vector<1x32xf32> to vector<32x32xf32>
    %166 = arith.addf %164, %165 : vector<32x32xf32>
    %c1_74 = arith.constant 1 : index
    %c0_75 = arith.constant 0 : index
    %c0_76 = arith.constant 0 : index
    %167 = vector.load %arg15[%c1_74, %c0_75, %c0_76] : memref<2x32x96xbf16, #tpu.memory_space<vmem>>, vector<1x32x96xbf16>
    %168 = vector.shape_cast %167 : vector<1x32x96xbf16> to vector<32x96xbf16>
    %169 = arith.truncf %166 : vector<32x32xf32> to vector<32x32xbf16>
    %cst_77 = arith.constant dense<0.000000e+00> : vector<32x96xf32>
    %170 = tpu.matmul %169, %168, %cst_77 {dimension_numbers = #tpu.dot_dimension_numbers<[1], [0], [0], [1], [0, 0, 1, 1], [], []>} : vector<32x32xbf16>, vector<32x96xbf16>, vector<32x96xf32> -> vector<32x96xf32>
    %c1_78 = arith.constant 1 : index
    %c0_79 = arith.constant 0 : index
    %c0_80 = arith.constant 0 : index
    %171 = vector.load %arg16[%c1_78, %c0_79, %c0_80] : memref<2x1x96xf32, #tpu.memory_space<vmem>>, vector<1x1x96xf32>
    %172 = vector.shape_cast %171 : vector<1x1x96xf32> to vector<1x96xf32>
    %173 = vector.broadcast %172 : vector<1x96xf32> to vector<32x96xf32>
    %174 = arith.addf %170, %173 : vector<32x96xf32>
    %175 = vector.extract_strided_slice %174 {offsets = [0, 0], sizes = [32, 16], strides = [1, 1]} : vector<32x96xf32> to vector<32x16xf32>
    %176 = vector.extract_strided_slice %174 {offsets = [0, 32], sizes = [32, 16], strides = [1, 1]} : vector<32x96xf32> to vector<32x16xf32>
    %177 = vector.extract_strided_slice %174 {offsets = [0, 64], sizes = [32, 16], strides = [1, 1]} : vector<32x96xf32> to vector<32x16xf32>
    %178 = arith.truncf %175 : vector<32x16xf32> to vector<32x16xbf16>
    %179 = arith.truncf %176 : vector<32x16xf32> to vector<32x16xbf16>
    %cst_81 = arith.constant dense<0.000000e+00> : vector<32x32xf32>
    %180 = tpu.matmul %178, %179, %cst_81 {dimension_numbers = #tpu.dot_dimension_numbers<[1], [1], [0], [0], [0, 0, 1, 0], [], []>} : vector<32x16xbf16>, vector<32x16xbf16>, vector<32x32xf32> -> vector<32x32xf32>
    %cst_82 = arith.constant 2.500000e-01 : f32
    %181 = vector.broadcast %cst_82 : f32 to vector<32x32xf32>
    %182 = arith.mulf %180, %181 : vector<32x32xf32>
    %183 = arith.addf %182, %1 : vector<32x32xf32>
    %cst_83 = arith.constant dense<0xFF800000> : vector<32xf32>
    %184 = vector.multi_reduction <maximumf>, %183, %cst_83 [1] : vector<32x32xf32> to vector<32xf32>
    %185 = vector.shape_cast %184 : vector<32xf32> to vector<32x1xf32>
    %186 = vector.broadcast %185 : vector<32x1xf32> to vector<32x32xf32>
    %187 = arith.subf %183, %186 : vector<32x32xf32>
    %188 = math.exp %187 : vector<32x32xf32>
    %cst_84 = arith.constant dense<0.000000e+00> : vector<32xf32>
    %189 = vector.multi_reduction <add>, %188, %cst_84 [1] : vector<32x32xf32> to vector<32xf32>
    %190 = vector.shape_cast %189 : vector<32xf32> to vector<32x1xf32>
    %191 = tpu.reciprocal %190 {approx = true} : vector<32x1xf32> -> vector<32x1xf32>
    %192 = vector.broadcast %191 : vector<32x1xf32> to vector<32x32xf32>
    %193 = arith.mulf %188, %192 : vector<32x32xf32>
    %194 = arith.truncf %193 : vector<32x32xf32> to vector<32x32xbf16>
    %195 = arith.truncf %177 : vector<32x16xf32> to vector<32x16xbf16>
    %cst_85 = arith.constant dense<0.000000e+00> : vector<32x16xf32>
    %196 = tpu.matmul %194, %195, %cst_85 {dimension_numbers = #tpu.dot_dimension_numbers<[1], [0], [0], [1], [0, 0, 1, 1], [], []>} : vector<32x32xbf16>, vector<32x16xbf16>, vector<32x16xf32> -> vector<32x16xf32>
    %197 = vector.extract_strided_slice %174 {offsets = [0, 16], sizes = [32, 16], strides = [1, 1]} : vector<32x96xf32> to vector<32x16xf32>
    %198 = vector.extract_strided_slice %174 {offsets = [0, 48], sizes = [32, 16], strides = [1, 1]} : vector<32x96xf32> to vector<32x16xf32>
    %199 = vector.extract_strided_slice %174 {offsets = [0, 80], sizes = [32, 16], strides = [1, 1]} : vector<32x96xf32> to vector<32x16xf32>
    %200 = arith.truncf %197 : vector<32x16xf32> to vector<32x16xbf16>
    %201 = arith.truncf %198 : vector<32x16xf32> to vector<32x16xbf16>
    %cst_86 = arith.constant dense<0.000000e+00> : vector<32x32xf32>
    %202 = tpu.matmul %200, %201, %cst_86 {dimension_numbers = #tpu.dot_dimension_numbers<[1], [1], [0], [0], [0, 0, 1, 0], [], []>} : vector<32x16xbf16>, vector<32x16xbf16>, vector<32x32xf32> -> vector<32x32xf32>
    %cst_87 = arith.constant 2.500000e-01 : f32
    %203 = vector.broadcast %cst_87 : f32 to vector<32x32xf32>
    %204 = arith.mulf %202, %203 : vector<32x32xf32>
    %205 = arith.addf %204, %1 : vector<32x32xf32>
    %cst_88 = arith.constant dense<0xFF800000> : vector<32xf32>
    %206 = vector.multi_reduction <maximumf>, %205, %cst_88 [1] : vector<32x32xf32> to vector<32xf32>
    %207 = vector.shape_cast %206 : vector<32xf32> to vector<32x1xf32>
    %208 = vector.broadcast %207 : vector<32x1xf32> to vector<32x32xf32>
    %209 = arith.subf %205, %208 : vector<32x32xf32>
    %210 = math.exp %209 : vector<32x32xf32>
    %cst_89 = arith.constant dense<0.000000e+00> : vector<32xf32>
    %211 = vector.multi_reduction <add>, %210, %cst_89 [1] : vector<32x32xf32> to vector<32xf32>
    %212 = vector.shape_cast %211 : vector<32xf32> to vector<32x1xf32>
    %213 = tpu.reciprocal %212 {approx = true} : vector<32x1xf32> -> vector<32x1xf32>
    %214 = vector.broadcast %213 : vector<32x1xf32> to vector<32x32xf32>
    %215 = arith.mulf %210, %214 : vector<32x32xf32>
    %216 = arith.truncf %215 : vector<32x32xf32> to vector<32x32xbf16>
    %217 = arith.truncf %199 : vector<32x16xf32> to vector<32x16xbf16>
    %cst_90 = arith.constant dense<0.000000e+00> : vector<32x16xf32>
    %218 = tpu.matmul %216, %217, %cst_90 {dimension_numbers = #tpu.dot_dimension_numbers<[1], [0], [0], [1], [0, 0, 1, 1], [], []>} : vector<32x32xbf16>, vector<32x16xbf16>, vector<32x16xf32> -> vector<32x16xf32>
    %219 = tpu.concatenate %196, %218 in 1 : vector<32x16xf32>, vector<32x16xf32> -> vector<32x32xf32>
    %c1_91 = arith.constant 1 : index
    %c0_92 = arith.constant 0 : index
    %c0_93 = arith.constant 0 : index
    %220 = vector.load %arg17[%c1_91, %c0_92, %c0_93] : memref<2x32x32xbf16, #tpu.memory_space<vmem>>, vector<1x32x32xbf16>
    %221 = vector.shape_cast %220 : vector<1x32x32xbf16> to vector<32x32xbf16>
    %222 = arith.truncf %219 : vector<32x32xf32> to vector<32x32xbf16>
    %cst_94 = arith.constant dense<0.000000e+00> : vector<32x32xf32>
    %223 = tpu.matmul %222, %221, %cst_94 {dimension_numbers = #tpu.dot_dimension_numbers<[1], [0], [0], [1], [0, 0, 1, 1], [], []>} : vector<32x32xbf16>, vector<32x32xbf16>, vector<32x32xf32> -> vector<32x32xf32>
    %224 = arith.addf %140, %223 : vector<32x32xf32>
    %c1_95 = arith.constant 1 : index
    %c0_96 = arith.constant 0 : index
    %c0_97 = arith.constant 0 : index
    %225 = vector.load %arg18[%c1_95, %c0_96, %c0_97] : memref<2x1x32xf32, #tpu.memory_space<vmem>>, vector<1x1x32xf32>
    %226 = vector.shape_cast %225 : vector<1x1x32xf32> to vector<1x32xf32>
    %227 = vector.broadcast %226 : vector<1x32xf32> to vector<32x32xf32>
    %228 = arith.addf %224, %227 : vector<32x32xf32>
    %c1_98 = arith.constant 1 : index
    %c0_99 = arith.constant 0 : index
    %c0_100 = arith.constant 0 : index
    %229 = vector.load %arg19[%c1_98, %c0_99, %c0_100] : memref<2x1x32xf32, #tpu.memory_space<vmem>>, vector<1x1x32xf32>
    %230 = vector.shape_cast %229 : vector<1x1x32xf32> to vector<1x32xf32>
    %c1_101 = arith.constant 1 : index
    %c0_102 = arith.constant 0 : index
    %c0_103 = arith.constant 0 : index
    %231 = vector.load %arg20[%c1_101, %c0_102, %c0_103] : memref<2x1x32xf32, #tpu.memory_space<vmem>>, vector<1x1x32xf32>
    %232 = vector.shape_cast %231 : vector<1x1x32xf32> to vector<1x32xf32>
    %cst_104 = arith.constant dense<0.000000e+00> : vector<32xf32>
    %233 = vector.multi_reduction <add>, %228, %cst_104 [1] : vector<32x32xf32> to vector<32xf32>
    %234 = vector.shape_cast %233 : vector<32xf32> to vector<32x1xf32>
    %cst_105 = arith.constant 3.200000e+01 : f32
    %235 = vector.broadcast %cst_105 : f32 to vector<32x1xf32>
    %236 = arith.divf %234, %235 : vector<32x1xf32>
    %237 = vector.broadcast %236 : vector<32x1xf32> to vector<32x32xf32>
    %238 = arith.subf %228, %237 : vector<32x32xf32>
    %239 = arith.mulf %238, %238 : vector<32x32xf32>
    %cst_106 = arith.constant dense<0.000000e+00> : vector<32xf32>
    %240 = vector.multi_reduction <add>, %239, %cst_106 [1] : vector<32x32xf32> to vector<32xf32>
    %241 = vector.shape_cast %240 : vector<32xf32> to vector<32x1xf32>
    %cst_107 = arith.constant 3.200000e+01 : f32
    %242 = vector.broadcast %cst_107 : f32 to vector<32x1xf32>
    %243 = arith.divf %241, %242 : vector<32x1xf32>
    %244 = vector.broadcast %236 : vector<32x1xf32> to vector<32x32xf32>
    %245 = arith.subf %228, %244 : vector<32x32xf32>
    %cst_108 = arith.constant 9.99999974E-6 : f32
    %246 = vector.broadcast %cst_108 : f32 to vector<32x1xf32>
    %247 = arith.addf %243, %246 : vector<32x1xf32>
    %248 = math.rsqrt %247 : vector<32x1xf32>
    %249 = vector.broadcast %248 : vector<32x1xf32> to vector<32x32xf32>
    %250 = arith.mulf %245, %249 : vector<32x32xf32>
    %251 = vector.broadcast %230 : vector<1x32xf32> to vector<32x32xf32>
    %252 = arith.mulf %250, %251 : vector<32x32xf32>
    %253 = vector.broadcast %232 : vector<1x32xf32> to vector<32x32xf32>
    %254 = arith.addf %252, %253 : vector<32x32xf32>
    %c1_109 = arith.constant 1 : index
    %c0_110 = arith.constant 0 : index
    %c0_111 = arith.constant 0 : index
    %255 = vector.load %arg21[%c1_109, %c0_110, %c0_111] : memref<2x32x128xbf16, #tpu.memory_space<vmem>>, vector<1x32x128xbf16>
    %256 = vector.shape_cast %255 : vector<1x32x128xbf16> to vector<32x128xbf16>
    %257 = arith.truncf %254 : vector<32x32xf32> to vector<32x32xbf16>
    %cst_112 = arith.constant dense<0.000000e+00> : vector<32x128xf32>
    %258 = tpu.matmul %257, %256, %cst_112 {dimension_numbers = #tpu.dot_dimension_numbers<[1], [0], [0], [1], [0, 0, 1, 1], [], []>} : vector<32x32xbf16>, vector<32x128xbf16>, vector<32x128xf32> -> vector<32x128xf32>
    %c1_113 = arith.constant 1 : index
    %c0_114 = arith.constant 0 : index
    %c0_115 = arith.constant 0 : index
    %259 = vector.load %arg22[%c1_113, %c0_114, %c0_115] : memref<2x1x128xf32, #tpu.memory_space<vmem>>, vector<1x1x128xf32>
    %260 = vector.shape_cast %259 : vector<1x1x128xf32> to vector<1x128xf32>
    %261 = vector.broadcast %260 : vector<1x128xf32> to vector<32x128xf32>
    %262 = arith.addf %258, %261 : vector<32x128xf32>
    %cst_116 = arith.constant 1.702000e+00 : f32
    %263 = vector.broadcast %cst_116 : f32 to vector<32x128xf32>
    %264 = arith.mulf %263, %262 : vector<32x128xf32>
    %265 = arith.negf %264 : vector<32x128xf32>
    %266 = math.exp %265 : vector<32x128xf32>
    %cst_117 = arith.constant 1.000000e+00 : f32
    %267 = vector.broadcast %cst_117 : f32 to vector<32x128xf32>
    %268 = arith.addf %267, %266 : vector<32x128xf32>
    %269 = arith.divf %267, %268 : vector<32x128xf32>
    %270 = arith.mulf %262, %269 : vector<32x128xf32>
    %c1_118 = arith.constant 1 : index
    %c0_119 = arith.constant 0 : index
    %c0_120 = arith.constant 0 : index
    %271 = vector.load %arg23[%c1_118, %c0_119, %c0_120] : memref<2x128x32xbf16, #tpu.memory_space<vmem>>, vector<1x128x32xbf16>
    %272 = vector.shape_cast %271 : vector<1x128x32xbf16> to vector<128x32xbf16>
    %273 = arith.truncf %270 : vector<32x128xf32> to vector<32x128xbf16>
    %cst_121 = arith.constant dense<0.000000e+00> : vector<32x32xf32>
    %274 = tpu.matmul %273, %272, %cst_121 {dimension_numbers = #tpu.dot_dimension_numbers<[1], [0], [0], [1], [0, 0, 1, 1], [], []>} : vector<32x128xbf16>, vector<128x32xbf16>, vector<32x32xf32> -> vector<32x32xf32>
    %275 = arith.addf %228, %274 : vector<32x32xf32>
    %c1_122 = arith.constant 1 : index
    %c0_123 = arith.constant 0 : index
    %c0_124 = arith.constant 0 : index
    %276 = vector.load %arg24[%c1_122, %c0_123, %c0_124] : memref<2x1x32xf32, #tpu.memory_space<vmem>>, vector<1x1x32xf32>
    %277 = vector.shape_cast %276 : vector<1x1x32xf32> to vector<1x32xf32>
    %278 = vector.broadcast %277 : vector<1x32xf32> to vector<32x32xf32>
    %279 = arith.addf %275, %278 : vector<32x32xf32>
    %c0_125 = arith.constant 0 : index
    %c0_126 = arith.constant 0 : index
    %280 = vector.load %arg4[%c0_125, %c0_126] : memref<1x32xf32, #tpu.memory_space<vmem>>, vector<1x32xf32>
    %c0_127 = arith.constant 0 : index
    %c0_128 = arith.constant 0 : index
    %281 = vector.load %arg5[%c0_127, %c0_128] : memref<1x32xf32, #tpu.memory_space<vmem>>, vector<1x32xf32>
    %cst_129 = arith.constant dense<0.000000e+00> : vector<32xf32>
    %282 = vector.multi_reduction <add>, %279, %cst_129 [1] : vector<32x32xf32> to vector<32xf32>
    %283 = vector.shape_cast %282 : vector<32xf32> to vector<32x1xf32>
    %cst_130 = arith.constant 3.200000e+01 : f32
    %284 = vector.broadcast %cst_130 : f32 to vector<32x1xf32>
    %285 = arith.divf %283, %284 : vector<32x1xf32>
    %286 = vector.broadcast %285 : vector<32x1xf32> to vector<32x32xf32>
    %287 = arith.subf %279, %286 : vector<32x32xf32>
    %288 = arith.mulf %287, %287 : vector<32x32xf32>
    %cst_131 = arith.constant dense<0.000000e+00> : vector<32xf32>
    %289 = vector.multi_reduction <add>, %288, %cst_131 [1] : vector<32x32xf32> to vector<32xf32>
    %290 = vector.shape_cast %289 : vector<32xf32> to vector<32x1xf32>
    %cst_132 = arith.constant 3.200000e+01 : f32
    %291 = vector.broadcast %cst_132 : f32 to vector<32x1xf32>
    %292 = arith.divf %290, %291 : vector<32x1xf32>
    %293 = vector.broadcast %285 : vector<32x1xf32> to vector<32x32xf32>
    %294 = arith.subf %279, %293 : vector<32x32xf32>
    %cst_133 = arith.constant 9.99999974E-6 : f32
    %295 = vector.broadcast %cst_133 : f32 to vector<32x1xf32>
    %296 = arith.addf %292, %295 : vector<32x1xf32>
    %297 = math.rsqrt %296 : vector<32x1xf32>
    %298 = vector.broadcast %297 : vector<32x1xf32> to vector<32x32xf32>
    %299 = arith.mulf %294, %298 : vector<32x32xf32>
    %300 = vector.broadcast %280 : vector<1x32xf32> to vector<32x32xf32>
    %301 = arith.mulf %299, %300 : vector<32x32xf32>
    %302 = vector.broadcast %281 : vector<1x32xf32> to vector<32x32xf32>
    %303 = arith.addf %301, %302 : vector<32x32xf32>
    %c0_134 = arith.constant 0 : index
    %c0_135 = arith.constant 0 : index
    %304 = vector.load %arg2[%c0_134, %c0_135] : memref<4x32xf32, #tpu.memory_space<vmem>>, vector<4x32xf32>
    %305 = arith.truncf %304 : vector<4x32xf32> to vector<4x32xbf16>
    %306 = arith.truncf %303 : vector<32x32xf32> to vector<32x32xbf16>
    %cst_136 = arith.constant dense<0.000000e+00> : vector<4x32xf32>
    %307 = tpu.matmul %305, %306, %cst_136 {dimension_numbers = #tpu.dot_dimension_numbers<[1], [0], [0], [1], [0, 0, 1, 1], [], []>} : vector<4x32xbf16>, vector<32x32xbf16>, vector<4x32xf32> -> vector<4x32xf32>
    %c0_137 = arith.constant 0 : index
    %c0_138 = arith.constant 0 : index
    %308 = vector.load %arg6[%c0_137, %c0_138] : memref<32x32xbf16, #tpu.memory_space<vmem>>, vector<32x32xbf16>
    %309 = arith.truncf %307 : vector<4x32xf32> to vector<4x32xbf16>
    %cst_139 = arith.constant dense<0.000000e+00> : vector<4x32xf32>
    %310 = tpu.matmul %309, %308, %cst_139 {dimension_numbers = #tpu.dot_dimension_numbers<[1], [0], [0], [1], [0, 0, 1, 1], [], []>} : vector<4x32xbf16>, vector<32x32xbf16>, vector<4x32xf32> -> vector<4x32xf32>
    %311 = arith.mulf %310, %310 : vector<4x32xf32>
    %cst_140 = arith.constant dense<0.000000e+00> : vector<4xf32>
    %312 = vector.multi_reduction <add>, %311, %cst_140 [1] : vector<4x32xf32> to vector<4xf32>
    %313 = vector.shape_cast %312 : vector<4xf32> to vector<4x1xf32>
    %cst_141 = arith.constant 9.99999996E-13 : f32
    %314 = vector.broadcast %cst_141 : f32 to vector<4x1xf32>
    %315 = arith.maximumf %313, %314 : vector<4x1xf32>
    %316 = math.rsqrt %315 : vector<4x1xf32>
    %317 = vector.broadcast %316 : vector<4x1xf32> to vector<4x32xf32>
    %318 = arith.mulf %310, %317 : vector<4x32xf32>
    %c0_142 = arith.constant 0 : index
    %c0_143 = arith.constant 0 : index
    %319 = vector.load %arg7[%c0_142, %c0_143] : memref<32x3xf32, #tpu.memory_space<vmem>>, vector<32x3xf32>
    %c0_144 = arith.constant 0 : index
    %c0_145 = arith.constant 0 : index
    %320 = vector.load %arg8[%c0_144, %c0_145] : memref<3x32xbf16, #tpu.memory_space<vmem>>, vector<3x32xbf16>
    %321 = arith.truncf %319 : vector<32x3xf32> to vector<32x3xbf16>
    %cst_146 = arith.constant dense<0.000000e+00> : vector<32x32xf32>
    %322 = tpu.matmul %321, %320, %cst_146 {dimension_numbers = #tpu.dot_dimension_numbers<[1], [0], [0], [1], [0, 0, 1, 1], [], []>} : vector<32x3xbf16>, vector<3x32xbf16>, vector<32x32xf32> -> vector<32x32xf32>
    %c0_147 = arith.constant 0 : index
    %c0_148 = arith.constant 0 : index
    %323 = vector.load %arg9[%c0_147, %c0_148] : memref<1x32xf32, #tpu.memory_space<vmem>>, vector<1x32xf32>
    %324 = vector.broadcast %323 : vector<1x32xf32> to vector<32x32xf32>
    %325 = arith.addf %322, %324 : vector<32x32xf32>
    %cst_149 = arith.constant 0.000000e+00 : f32
    %326 = vector.broadcast %cst_149 : f32 to vector<32x32xf32>
    %327 = arith.maximumf %325, %326 : vector<32x32xf32>
    %c0_150 = arith.constant 0 : index
    %c0_151 = arith.constant 0 : index
    %328 = vector.load %arg10[%c0_150, %c0_151] : memref<32x64xbf16, #tpu.memory_space<vmem>>, vector<32x64xbf16>
    %329 = arith.truncf %327 : vector<32x32xf32> to vector<32x32xbf16>
    %cst_152 = arith.constant dense<0.000000e+00> : vector<32x64xf32>
    %330 = tpu.matmul %329, %328, %cst_152 {dimension_numbers = #tpu.dot_dimension_numbers<[1], [0], [0], [1], [0, 0, 1, 1], [], []>} : vector<32x32xbf16>, vector<32x64xbf16>, vector<32x64xf32> -> vector<32x64xf32>
    %c0_153 = arith.constant 0 : index
    %c0_154 = arith.constant 0 : index
    %331 = vector.load %arg11[%c0_153, %c0_154] : memref<1x64xf32, #tpu.memory_space<vmem>>, vector<1x64xf32>
    %332 = vector.broadcast %331 : vector<1x64xf32> to vector<32x64xf32>
    %333 = arith.addf %330, %332 : vector<32x64xf32>
    %cst_155 = arith.constant 0.000000e+00 : f32
    %334 = vector.broadcast %cst_155 : f32 to vector<32x64xf32>
    %335 = arith.maximumf %333, %334 : vector<32x64xf32>
    %336 = vector.shape_cast %335 : vector<32x64xf32> to vector<2x16x64xf32>
    %cst_156 = arith.constant dense<0xFF800000> : vector<2x64xf32>
    %337 = vector.multi_reduction <maximumf>, %336, %cst_156 [1] : vector<2x16x64xf32> to vector<2x64xf32>
    %c0_157 = arith.constant 0 : index
    %c0_158 = arith.constant 0 : index
    %338 = vector.load %arg12[%c0_157, %c0_158] : memref<64x32xbf16, #tpu.memory_space<vmem>>, vector<64x32xbf16>
    %339 = arith.truncf %337 : vector<2x64xf32> to vector<2x64xbf16>
    %cst_159 = arith.constant dense<0.000000e+00> : vector<2x32xf32>
    %340 = tpu.matmul %339, %338, %cst_159 {dimension_numbers = #tpu.dot_dimension_numbers<[1], [0], [0], [1], [0, 0, 1, 1], [], []>} : vector<2x64xbf16>, vector<64x32xbf16>, vector<2x32xf32> -> vector<2x32xf32>
    %341 = arith.mulf %340, %340 : vector<2x32xf32>
    %cst_160 = arith.constant dense<0.000000e+00> : vector<2xf32>
    %342 = vector.multi_reduction <add>, %341, %cst_160 [1] : vector<2x32xf32> to vector<2xf32>
    %343 = vector.shape_cast %342 : vector<2xf32> to vector<2x1xf32>
    %cst_161 = arith.constant 9.99999996E-13 : f32
    %344 = vector.broadcast %cst_161 : f32 to vector<2x1xf32>
    %345 = arith.maximumf %343, %344 : vector<2x1xf32>
    %346 = math.rsqrt %345 : vector<2x1xf32>
    %347 = vector.broadcast %346 : vector<2x1xf32> to vector<2x32xf32>
    %348 = arith.mulf %340, %347 : vector<2x32xf32>
    %349 = arith.truncf %348 : vector<2x32xf32> to vector<2x32xbf16>
    %350 = arith.truncf %318 : vector<4x32xf32> to vector<4x32xbf16>
    %cst_162 = arith.constant dense<0.000000e+00> : vector<2x4xf32>
    %351 = tpu.matmul %349, %350, %cst_162 {dimension_numbers = #tpu.dot_dimension_numbers<[1], [1], [0], [0], [0, 0, 1, 0], [], []>} : vector<2x32xbf16>, vector<4x32xbf16>, vector<2x4xf32> -> vector<2x4xf32>
    %c0_163 = arith.constant 0 : index
    %352 = memref.load %arg0[%c0_163] : memref<1xf32, #tpu.memory_space<smem>>
    %353 = vector.broadcast %352 : f32 to vector<2x4xf32>
    %354 = arith.mulf %353, %351 : vector<2x4xf32>
    %c0_164 = arith.constant 0 : index
    %c0_165 = arith.constant 0 : index
    %355 = vector.load %arg25[%c0_164, %c0_165] : memref<2x4xf32, #tpu.memory_space<vmem>>, vector<2x4xf32>
    tpu.vector_store %arg25[%c0_164, %c0_165], %354 {strides = array<i32>} : memref<2x4xf32, #tpu.memory_space<vmem>>, vector<2x4xf32>,
    return
  }
}

</mosaic_0001>

<llo_original>
// kernel: le.8
$region0: #{le.8}
  %s0 = inlined_call_operand.vmem [shape: s32[4,8], index: 0, kind: input, shape index: {}]
  %s1 = inlined_call_operand.vmem [shape: s32[32], index: 1, kind: output, shape index: {}]
  $region1: #{le.8} parent=0
    #allocation0 [shape = 'u8[4096]{0}', space=vmem, size = 0x1000, scoped, tag = 'scoped mem for output reshape']
    #allocation1 [shape = 'u8[4096]{0}', space=vmem, size = 0x1000, scoped, tag = 'scoped mem for input reshape']
    %s3 = ssub.s32 16, 1
    %v4 = vld [vmem:[%s0] sm:%s3]
    %5 = vst [vmem:[#allocation1] sm:%s3] %v4
    %v6 = vld [vmem:[#allocation1] sm:$0x1]
    %vm7 = vcmask 64512
    %8 = vst.msk [vmem:[#allocation0] sm:$0x1] %vm7, %v6
    %s9 = scalar_lea.vmem [#allocation1], 3
    %v10 = vld [vmem:[%s9] sm:$0x1]
    %11 = vrot.lane.b32.xlu0 %v10, 24
    %v12 = vpop.permute.xlu0 %11
    %vm13 = vcmask 261312
    %14 = vst.msk [vmem:[#allocation0] sm:$0x1] %vm13, %v12
    %s15 = scalar_lea.vmem [#allocation1], 2
    %v16 = vld [vmem:[%s15] sm:$0x1]
    %17 = vrot.lane.b32.xlu0 %v16, 16
    %v18 = vpop.permute.xlu0 %17
    %vm19 = vcmask 195712
    %20 = vst.msk [vmem:[#allocation0] sm:$0x1] %vm19, %v18
    %s21 = scalar_lea.vmem [#allocation1], 1
    %v22 = vld [vmem:[%s21] sm:$0x1]
    %23 = vrot.lane.b32.xlu0 %v22, 8
    %v24 = vpop.permute.xlu0 %23
    %vm25 = vcmask 130112
    %26 = vst.msk [vmem:[#allocation0] sm:$0x1] %vm25, %v24
    %s28 = ssub.s32 2, 1
    %v29 = vld [vmem:[#allocation0] sm:%s28]
    %s31 = ssub.s32 2, 1
    %32 = vst [vmem:[%s1] sm:%s31] %v29

// kernel: custom_ulip_forward.1
$region0: #{custom_ulip_forward.1}
  #allocation0 [shape = 'u32[]', space=smem, size = 0x4, offset = 0x4, fixed_abs, tag = 'smem constant byte address 0x4 - core index']
  #allocation1 [shape = 'u32[72,128]{1,0:T(1,128)}', space=vmem, size = 0x9000, scoped, tag = 'internal scratch']
  #allocation2 [shape = 'f32[1]{0:T(128)S(6)}', space=smem, size = 0x200, scoped, tag = 'scoped memory for custom_ulip_forward.1']
  %s0 = inlined_call_operand.<no memory space> [shape: f32[1], index: 0, kind: input, shape index: {}]
  %s1 = inlined_call_operand.vmem [shape: f32[32,32], index: 1, kind: input, shape index: {}]
  %s2 = inlined_call_operand.vmem [shape: f32[4,32], index: 2, kind: input, shape index: {}]
  %s3 = inlined_call_operand.vmem [shape: f32[32,32], index: 3, kind: input, shape index: {}]
  %s4 = inlined_call_operand.vmem [shape: f32[1,32], index: 4, kind: input, shape index: {}]
  %s5 = inlined_call_operand.vmem [shape: f32[1,32], index: 5, kind: input, shape index: {}]
  %s6 = inlined_call_operand.vmem [shape: bf16[32,32], index: 6, kind: input, shape index: {}]
  %s7 = inlined_call_operand.vmem [shape: f32[32,3], index: 7, kind: input, shape index: {}]
  %s8 = inlined_call_operand.vmem [shape: bf16[3,32], index: 8, kind: input, shape index: {}]
  %s9 = inlined_call_operand.vmem [shape: f32[1,32], index: 9, kind: input, shape index: {}]
  %s10 = inlined_call_operand.vmem [shape: bf16[32,64], index: 10, kind: input, shape index: {}]
  %s11 = inlined_call_operand.vmem [shape: f32[1,64], index: 11, kind: input, shape index: {}]
  %s12 = inlined_call_operand.vmem [shape: bf16[64,32], index: 12, kind: input, shape index: {}]
  %s13 = inlined_call_operand.vmem [shape: f32[2,1,32], index: 13, kind: input, shape index: {}]
  %s14 = inlined_call_operand.vmem [shape: f32[2,1,32], index: 14, kind: input, shape index: {}]
  %s15 = inlined_call_operand.vmem [shape: bf16[2,32,96], index: 15, kind: input, shape index: {}]
  %s16 = inlined_call_operand.vmem [shape: f32[2,1,96], index: 16, kind: input, shape index: {}]
  %s17 = inlined_call_operand.vmem [shape: bf16[2,32,32], index: 17, kind: input, shape index: {}]
  %s18 = inlined_call_operand.vmem [shape: f32[2,1,32], index: 18, kind: input, shape index: {}]
  %s19 = inlined_call_operand.vmem [shape: f32[2,1,32], index: 19, kind: input, shape index: {}]
  %s20 = inlined_call_operand.vmem [shape: f32[2,1,32], index: 20, kind: input, shape index: {}]
  %s21 = inlined_call_operand.vmem [shape: bf16[2,32,128], index: 21, kind: input, shape index: {}]
  %s22 = inlined_call_operand.vmem [shape: f32[2,1,128], index: 22, kind: input, shape index: {}]
  %s23 = inlined_call_operand.vmem [shape: bf16[2,128,32], index: 23, kind: input, shape index: {}]
  %s24 = inlined_call_operand.vmem [shape: f32[2,1,32], index: 24, kind: input, shape index: {}]
  %s25 = inlined_call_operand.hbm [shape: f32[2,4], index: 25, kind: output, shape index: {}]
  %s26 = sld [smem:[#allocation0]]
  $region110: #{custom_ulip_forward.1} parent=0
    _
  %s28 = ssub.s32 1, %s26
  %s29 = scalar_select 0, %s28, %s26
  %30 = sst [smem:[#allocation2]] %s0
  $region1: #{custom_ulip_forward.1} parent=0
    #allocation3 [shape = 'u8[1024]{0}', space=vmem, size = 0x400, scoped, tag = 'output window, operand 0, single buffered']
    #allocation4 [shape = 's32[1]{0}', space=sflag, size = 0x4, scoped, tag = 'scoped memory for custom_ulip_forward.1']
    %31 = vsyncpa [#allocation4], 0
    // Predicated region
    $region2: #{custom_ulip_forward.1} parent=1 // pred_check
      _
    $region3: #{custom_ulip_forward.1} parent=1 // pred_check_branch
      %33 = sbr.rel (0) target = $region5
    $region4: #{custom_ulip_forward.1} parent=1 // pred_region
      _
    $region5: #{custom_ulip_forward.1} parent=1 // pred_fallthru
      _
    // Predicated region
    $region6: #{custom_ulip_forward.1} parent=1 // pred_check
      _
    $region7: #{custom_ulip_forward.1} parent=1 // pred_check_branch
      %35 = sbr.rel (0) target = $region9
    $region8: #{custom_ulip_forward.1} parent=1 // pred_region
      _
    $region9: #{custom_ulip_forward.1} parent=1 // pred_fallthru
      _
    // Predicated region
    $region10: #{custom_ulip_forward.1} parent=1 // pred_check
      _
    $region11: #{custom_ulip_forward.1} parent=1 // pred_check_branch
      %37 = sbr.rel (0) target = $region13
    $region12: #{custom_ulip_forward.1} parent=1 // pred_region
      _
    $region13: #{custom_ulip_forward.1} parent=1 // pred_fallthru
      _
    // Predicated region
    $region14: #{custom_ulip_forward.1} parent=1 // pred_check
      _
    $region15: #{custom_ulip_forward.1} parent=1 // pred_check_branch
      %39 = sbr.rel (0) target = $region17
    $region16: #{custom_ulip_forward.1} parent=1 // pred_region
      _
    $region17: #{custom_ulip_forward.1} parent=1 // pred_fallthru
      _
    // Predicated region
    $region18: #{custom_ulip_forward.1} parent=1 // pred_check
      _
    $region19: #{custom_ulip_forward.1} parent=1 // pred_check_branch
      %41 = sbr.rel (0) target = $region21
    $region20: #{custom_ulip_forward.1} parent=1 // pred_region
      _
    $region21: #{custom_ulip_forward.1} parent=1 // pred_fallthru
      _
    // Predicated region
    $region22: #{custom_ulip_forward.1} parent=1 // pred_check
      _
    $region23: #{custom_ulip_forward.1} parent=1 // pred_check_branch
      %43 = sbr.rel (0) target = $region25
    $region24: #{custom_ulip_forward.1} parent=1 // pred_region
      _
    $region25: #{custom_ulip_forward.1} parent=1 // pred_fallthru
      _
    // Predicated region
    $region26: #{custom_ulip_forward.1} parent=1 // pred_check
      _
    $region27: #{custom_ulip_forward.1} parent=1 // pred_check_branch
      %45 = sbr.rel (0) target = $region29
    $region28: #{custom_ulip_forward.1} parent=1 // pred_region
      _
    $region29: #{custom_ulip_forward.1} parent=1 // pred_fallthru
      _
    // Predicated region
    $region30: #{custom_ulip_forward.1} parent=1 // pred_check
      _
    $region31: #{custom_ulip_forward.1} parent=1 // pred_check_branch
      %47 = sbr.rel (0) target = $region33
    $region32: #{custom_ulip_forward.1} parent=1 // pred_region
      _
    $region33: #{custom_ulip_forward.1} parent=1 // pred_fallthru
      _
    // Predicated region
    $region34: #{custom_ulip_forward.1} parent=1 // pred_check
      _
    $region35: #{custom_ulip_forward.1} parent=1 // pred_check_branch
      %49 = sbr.rel (0) target = $region37
    $region36: #{custom_ulip_forward.1} parent=1 // pred_region
      _
    $region37: #{custom_ulip_forward.1} parent=1 // pred_fallthru
      _
    // Predicated region
    $region38: #{custom_ulip_forward.1} parent=1 // pred_check
      _
    $region39: #{custom_ulip_forward.1} parent=1 // pred_check_branch
      %51 = sbr.rel (0) target = $region41
    $region40: #{custom_ulip_forward.1} parent=1 // pred_region
      _
    $region41: #{custom_ulip_forward.1} parent=1 // pred_fallthru
      _
    // Predicated region
    $region42: #{custom_ulip_forward.1} parent=1 // pred_check
      _
    $region43: #{custom_ulip_forward.1} parent=1 // pred_check_branch
      %53 = sbr.rel (0) target = $region45
    $region44: #{custom_ulip_forward.1} parent=1 // pred_region
      _
    $region45: #{custom_ulip_forward.1} parent=1 // pred_fallthru
      _
    // Predicated region
    $region46: #{custom_ulip_forward.1} parent=1 // pred_check
      _
    $region47: #{custom_ulip_forward.1} parent=1 // pred_check_branch
      %55 = sbr.rel (0) target = $region49
    $region48: #{custom_ulip_forward.1} parent=1 // pred_region
      _
    $region49: #{custom_ulip_forward.1} parent=1 // pred_fallthru
      _
    // Predicated region
    $region50: #{custom_ulip_forward.1} parent=1 // pred_check
      _
    $region51: #{custom_ulip_forward.1} parent=1 // pred_check_branch
      %57 = sbr.rel (0) target = $region53
    $region52: #{custom_ulip_forward.1} parent=1 // pred_region
      _
    $region53: #{custom_ulip_forward.1} parent=1 // pred_fallthru
      _
    // Predicated region
    $region54: #{custom_ulip_forward.1} parent=1 // pred_check
      _
    $region55: #{custom_ulip_forward.1} parent=1 // pred_check_branch
      %59 = sbr.rel (0) target = $region57
    $region56: #{custom_ulip_forward.1} parent=1 // pred_region
      _
    $region57: #{custom_ulip_forward.1} parent=1 // pred_fallthru
      _
    // Predicated region
    $region58: #{custom_ulip_forward.1} parent=1 // pred_check
      _
    $region59: #{custom_ulip_forward.1} parent=1 // pred_check_branch
      %61 = sbr.rel (0) target = $region61
    $region60: #{custom_ulip_forward.1} parent=1 // pred_region
      _
    $region61: #{custom_ulip_forward.1} parent=1 // pred_fallthru
      _
    // Predicated region
    $region62: #{custom_ulip_forward.1} parent=1 // pred_check
      _
    $region63: #{custom_ulip_forward.1} parent=1 // pred_check_branch
      %63 = sbr.rel (0) target = $region65
    $region64: #{custom_ulip_forward.1} parent=1 // pred_region
      _
    $region65: #{custom_ulip_forward.1} parent=1 // pred_fallthru
      _
    // Predicated region
    $region66: #{custom_ulip_forward.1} parent=1 // pred_check
      _
    $region67: #{custom_ulip_forward.1} parent=1 // pred_check_branch
      %65 = sbr.rel (0) target = $region69
    $region68: #{custom_ulip_forward.1} parent=1 // pred_region
      _
    $region69: #{custom_ulip_forward.1} parent=1 // pred_fallthru
      _
    // Predicated region
    $region70: #{custom_ulip_forward.1} parent=1 // pred_check
      _
    $region71: #{custom_ulip_forward.1} parent=1 // pred_check_branch
      %67 = sbr.rel (0) target = $region73
    $region72: #{custom_ulip_forward.1} parent=1 // pred_region
      _
    $region73: #{custom_ulip_forward.1} parent=1 // pred_fallthru
      _
    // Predicated region
    $region74: #{custom_ulip_forward.1} parent=1 // pred_check
      _
    $region75: #{custom_ulip_forward.1} parent=1 // pred_check_branch
      %69 = sbr.rel (0) target = $region77
    $region76: #{custom_ulip_forward.1} parent=1 // pred_region
      _
    $region77: #{custom_ulip_forward.1} parent=1 // pred_fallthru
      _
    // Predicated region
    $region78: #{custom_ulip_forward.1} parent=1 // pred_check
      _
    $region79: #{custom_ulip_forward.1} parent=1 // pred_check_branch
      %71 = sbr.rel (0) target = $region81
    $region80: #{custom_ulip_forward.1} parent=1 // pred_region
      _
    $region81: #{custom_ulip_forward.1} parent=1 // pred_fallthru
      _
    // Predicated region
    $region82: #{custom_ulip_forward.1} parent=1 // pred_check
      _
    $region83: #{custom_ulip_forward.1} parent=1 // pred_check_branch
      %73 = sbr.rel (0) target = $region85
    $region84: #{custom_ulip_forward.1} parent=1 // pred_region
      _
    $region85: #{custom_ulip_forward.1} parent=1 // pred_fallthru
      _
    // Predicated region
    $region86: #{custom_ulip_forward.1} parent=1 // pred_check
      _
    $region87: #{custom_ulip_forward.1} parent=1 // pred_check_branch
      %75 = sbr.rel (0) target = $region89
    $region88: #{custom_ulip_forward.1} parent=1 // pred_region
      _
    $region89: #{custom_ulip_forward.1} parent=1 // pred_fallthru
      _
    // Predicated region
    $region90: #{custom_ulip_forward.1} parent=1 // pred_check
      _
    $region91: #{custom_ulip_forward.1} parent=1 // pred_check_branch
      %77 = sbr.rel (0) target = $region93
    $region92: #{custom_ulip_forward.1} parent=1 // pred_region
      _
    $region93: #{custom_ulip_forward.1} parent=1 // pred_fallthru
      _
    // Predicated region
    $region94: #{custom_ulip_forward.1} parent=1 // pred_check
      _
    $region95: #{custom_ulip_forward.1} parent=1 // pred_check_branch
      %79 = sbr.rel (0) target = $region97
    $region96: #{custom_ulip_forward.1} parent=1 // pred_region
      _
    $region97: #{custom_ulip_forward.1} parent=1 // pred_fallthru
      _
    // Predicated region
    $region98: #{custom_ulip_forward.1} parent=1 // pred_check
      _
    $region99: #{custom_ulip_forward.1} parent=1 // pred_check_branch
      %81 = sbr.rel (0) target = $region101
    $region100: #{custom_ulip_forward.1} parent=1 // pred_region
      _
    $region101: #{custom_ulip_forward.1} parent=1 // pred_fallthru
      _
    %v83 = vld [vmem:[%s1] sm:$0xff]
    %v84 = vld [vmem:[%s1 + $0x8] sm:$0xff]
    %v85 = vld [vmem:[%s1 + $0x10] sm:$0xff]
    %v86 = vld [vmem:[%s1 + $0x18] sm:$0xff]
    %v87 = vld [vmem:[%s3] sm:$0xff]
    %v88 = vld [vmem:[%s3 + $0x8] sm:$0xff]
    %v89 = vld [vmem:[%s3 + $0x10] sm:$0xff]
    %v90 = vld [vmem:[%s3 + $0x18] sm:$0xff]
    %v91 = vld [vmem:[%s13] sm:$0x1]
    %v92 = vld [vmem:[%s14] sm:$0x1]
    %vm93 = vcmask 261120
    %v94 = vsel %vm93, %v83, 0.0
    %95 = vadd.xlane.f32.xlu0 %v94
    %v96 = vpop.xlane.xlu0 %95
    %v97 = vsel %vm93, %v84, 0.0
    %98 = vadd.xlane.f32.xlu0 %v97
    %v99 = vpop.xlane.xlu0 %98
    %v100 = vsel %vm93, %v85, 0.0
    %101 = vadd.xlane.f32.xlu0 %v100
    %v102 = vpop.xlane.xlu0 %101
    %v103 = vsel %vm93, %v86, 0.0
    %104 = vadd.xlane.f32.xlu0 %v103
    %v105 = vpop.xlane.xlu0 %104
    %v106 = vrcp.pop 32.0
    %v107 = vmul.f32 32.0, %v106
    %v108 = vsub.f32 1.0, %v107
    %v109 = vmul.f32 %v106, %v108
    %v110 = vadd.f32 %v106, %v109
    %vm111 = vweird.f32 %v106
    %v112 = vsel %vm111, %v106, %v110
    %v113 = vmul.f32 %v96, %v112
    %v114 = vmul.f32 %v99, %v112
    %v115 = vmul.f32 %v102, %v112
    %v116 = vmul.f32 %v105, %v112
    %v117 = vsub.f32 %v83, %v113
    %v118 = vsub.f32 %v84, %v114
    %v119 = vsub.f32 %v85, %v115
    %v120 = vsub.f32 %v86, %v116
    %v121 = vmul.f32 %v117, %v117
    %v122 = vmul.f32 %v118, %v118
    %v123 = vmul.f32 %v119, %v119
    %v124 = vmul.f32 %v120, %v120
    %v125 = vsel %vm93, %v121, 0.0
    %126 = vadd.xlane.f32.xlu0 %v125
    %v127 = vpop.xlane.xlu0 %126
    %v128 = vsel %vm93, %v122, 0.0
    %129 = vadd.xlane.f32.xlu0 %v128
    %v130 = vpop.xlane.xlu0 %129
    %v131 = vsel %vm93, %v123, 0.0
    %132 = vadd.xlane.f32.xlu0 %v131
    %v133 = vpop.xlane.xlu0 %132
    %v134 = vsel %vm93, %v124, 0.0
    %135 = vadd.xlane.f32.xlu0 %v134
    %v136 = vpop.xlane.xlu0 %135
    %v137 = vmul.f32 %v127, %v112
    %v138 = vmul.f32 %v130, %v112
    %v139 = vmul.f32 %v133, %v112
    %v140 = vmul.f32 %v136, %v112
    %v141 = vadd.f32 %v137, 1e-05
    %v142 = vadd.f32 %v138, 1e-05
    %v143 = vadd.f32 %v139, 1e-05
    %v144 = vadd.f32 %v140, 1e-05
    %v145 = vrsqrt.pop %v141
    %v146 = vmul.f32 %v145, %v141
    %v147 = vmul.f32 %v146, %v145
    %v148 = vmul.f32 0.5, %v147
    %v149 = vsub.f32 1.5, %v148
    %v150 = vmul.f32 %v145, %v149
    %vm151 = vweird.f32 %v141
    %vm152 = vweird.f32 %v145
    %vm153 = vmor %vm151, %vm152
    %v154 = vsel %vm153, %v145, %v150
    %v155 = vrsqrt.pop %v142
    %v156 = vmul.f32 %v155, %v142
    %v157 = vmul.f32 %v156, %v155
    %v158 = vmul.f32 0.5, %v157
    %v159 = vsub.f32 1.5, %v158
    %v160 = vmul.f32 %v155, %v159
    %vm161 = vweird.f32 %v142
    %vm162 = vweird.f32 %v155
    %vm163 = vmor %vm161, %vm162
    %v164 = vsel %vm163, %v155, %v160
    %v165 = vrsqrt.pop %v143
    %v166 = vmul.f32 %v165, %v143
    %v167 = vmul.f32 %v166, %v165
    %v168 = vmul.f32 0.5, %v167
    %v169 = vsub.f32 1.5, %v168
    %v170 = vmul.f32 %v165, %v169
    %vm171 = vweird.f32 %v143
    %vm172 = vweird.f32 %v165
    %vm173 = vmor %vm171, %vm172
    %v174 = vsel %vm173, %v165, %v170
    %v175 = vrsqrt.pop %v144
    %v176 = vmul.f32 %v175, %v144
    %v177 = vmul.f32 %v176, %v175
    %v178 = vmul.f32 0.5, %v177
    %v179 = vsub.f32 1.5, %v178
    %v180 = vmul.f32 %v175, %v179
    %vm181 = vweird.f32 %v144
    %vm182 = vweird.f32 %v175
    %vm183 = vmor %vm181, %vm182
    %v184 = vsel %vm183, %v175, %v180
    %v185 = vmul.f32 %v117, %v154
    %v186 = vmul.f32 %v118, %v164
    %v187 = vmul.f32 %v119, %v174
    %v188 = vmul.f32 %v120, %v184
    %v190 = vperm.slane %v91, 0
    %v192 = vmul.f32 %v185, %v190
    %v193 = vmul.f32 %v186, %v190
    %v194 = vmul.f32 %v187, %v190
    %v195 = vmul.f32 %v188, %v190
    %v197 = vperm.slane %v92, 0
    %v199 = vadd.f32 %v192, %v197
    %v200 = vadd.f32 %v193, %v197
    %v201 = vadd.f32 %v194, %v197
    %v202 = vadd.f32 %v195, %v197
    %v203 = vld [vmem:[%s15] sm:$0xf]
    %v204 = vld [vmem:[%s15 + $0x4] sm:$0xf]
    %v205 = vld [vmem:[%s15 + $0x8] sm:$0xf]
    %v206 = vld [vmem:[%s15 + $0xc] sm:$0xf]
    %v207 = vpack.c.bf16 %v200, %v199
    %v208 = vpack.c.bf16 %v202, %v201
    %v209 = vld [vmem:[%s16] sm:$0x1]
    %v211 = vperm.slane %v209, 0
    %v217 = vunpack.c.l.b16 %v203
    %v218 = vunpack.c.l.b16 %v204
    %v219 = vunpack.c.l.b16 %v205
    %v220 = vunpack.c.l.b16 %v206
    %v221 = vpack.c.b16 %v218, %v217
    %v222 = vpack.c.b16 %v220, %v219
    %v226 = vsel %vm93, %v207, 0
    %v229 = vsel %vm93, %v208, 0
    %231 = vmatpush.bf16.msra.mxu0 0
    %232 = vmatpush.bf16.msra.mxu0 0
    %233 = vmatpush.bf16.msra.mxu0 0
    %234 = vmatpush.bf16.msra.mxu0 0
    %235 = vmatpush.bf16.msra.mxu0 0
    %236 = vmatpush.bf16.msra.mxu0 0
    %237 = vmatpush.bf16.msra.mxu0 %v222
    %238 = vmatpush.bf16.msra.mxu0 %v221
    %239 = vmatmul.bf16.gmra.mxu0 %v226
    %v240 = vpop.f32.mrf.mxu0
    %v241 = vadd.f32 %v211, %v240
    %v242 = vpop.f32.mrf.mxu0
    %v243 = vadd.f32 %v211, %v242
    %244 = vmatmul.bf16.gmra.mxu0 %v229
    %v245 = vpop.f32.mrf.mxu0
    %v246 = vadd.f32 %v211, %v245
    %v247 = vpop.f32.mrf.mxu0
    %v248 = vadd.f32 %v211, %v247
    %249 = vdwg.mxu0
    %v250 = vpack.c.bf16 %v243, %v241
    %v251 = vpack.c.bf16 %v248, %v246
    %254 = vrot.lane.b32.xlu0 %v250, 96
    %v255 = vpop.permute.xlu0 %254
    %256 = vrot.lane.b32.xlu0 %v251, 96
    %v257 = vpop.permute.xlu0 %256
    %vm258 = vcmask 130048
    %v260 = vsel %vm258, %v250, 0
    %v263 = vsel %vm258, %v251, 0
    %v266 = vsel %vm258, %v255, 0
    %v269 = vsel %vm258, %v257, 0
    %271 = vmatpush.bf16.xpose.msra.mxu0 0
    %272 = vmatpush.bf16.xpose.msra.mxu0 0
    %273 = vmatpush.bf16.xpose.msra.mxu0 0
    %274 = vmatpush.bf16.xpose.msra.mxu0 0
    %275 = vmatpush.bf16.xpose.msra.mxu0 0
    %276 = vmatpush.bf16.xpose.msra.mxu0 0
    %277 = vmatpush.bf16.xpose.msra.mxu0 %v269
    %278 = vmatpush.bf16.xpose.msra.mxu0 %v266
    %279 = vmatmul.bf16.gmra.mxu0 %v260
    %v280 = vpop.f32.mrf.mxu0
    %v281 = vadd.f32 0.0, %v280
    %v282 = vpop.f32.mrf.mxu0
    %v283 = vadd.f32 0.0, %v282
    %284 = vmatmul.bf16.gmra.mxu0 %v263
    %v285 = vpop.f32.mrf.mxu0
    %v286 = vadd.f32 0.0, %v285
    %v287 = vpop.f32.mrf.mxu0
    %v288 = vadd.f32 0.0, %v287
    %289 = vdwg.mxu0
    %v290 = vmul.f32 %v281, 0.25
    %v291 = vmul.f32 %v283, 0.25
    %v292 = vmul.f32 %v286, 0.25
    %v293 = vmul.f32 %v288, 0.25
    %v294 = vadd.f32 %v290, %v87
    %v295 = vadd.f32 %v291, %v88
    %v296 = vadd.f32 %v292, %v89
    %v297 = vadd.f32 %v293, %v90
    %v298 = vsel %vm93, %v294, -inf
    %299 = vmax.xlane.f32.xlu0 %v298
    %v300 = vpop.xlane.xlu0 %299
    %v301 = vsel %vm93, %v295, -inf
    %302 = vmax.xlane.f32.xlu0 %v301
    %v303 = vpop.xlane.xlu0 %302
    %v304 = vsel %vm93, %v296, -inf
    %305 = vmax.xlane.f32.xlu0 %v304
    %v306 = vpop.xlane.xlu0 %305
    %v307 = vsel %vm93, %v297, -inf
    %308 = vmax.xlane.f32.xlu0 %v307
    %v309 = vpop.xlane.xlu0 %308
    %v310 = vsub.f32 %v294, %v300
    %v311 = vsub.f32 %v295, %v303
    %v312 = vsub.f32 %v296, %v306
    %v313 = vsub.f32 %v297, %v309
    %v314 = vmul.f32 %v310, 1.442695
    %v315 = vpow.pop %v314
    %v316 = vmul.f32 %v311, 1.442695
    %v317 = vpow.pop %v316
    %v318 = vmul.f32 %v312, 1.442695
    %v319 = vpow.pop %v318
    %v320 = vmul.f32 %v313, 1.442695
    %v321 = vpow.pop %v320
    %v322 = vsel %vm93, %v315, 0.0
    %323 = vadd.xlane.f32.xlu0 %v322
    %v324 = vpop.xlane.xlu0 %323
    %v325 = vsel %vm93, %v317, 0.0
    %326 = vadd.xlane.f32.xlu0 %v325
    %v327 = vpop.xlane.xlu0 %326
    %v328 = vsel %vm93, %v319, 0.0
    %329 = vadd.xlane.f32.xlu0 %v328
    %v330 = vpop.xlane.xlu0 %329
    %v331 = vsel %vm93, %v321, 0.0
    %332 = vadd.xlane.f32.xlu0 %v331
    %v333 = vpop.xlane.xlu0 %332
    %v334 = vrcp.pop %v324
    %v335 = vrcp.pop %v327
    %v336 = vrcp.pop %v330
    %v337 = vrcp.pop %v333
    %v338 = vmul.f32 %v315, %v334
    %v339 = vmul.f32 %v317, %v335
    %v340 = vmul.f32 %v319, %v336
    %v341 = vmul.f32 %v321, %v337
    %v342 = vpack.c.bf16 %v339, %v338
    %v343 = vpack.c.bf16 %v341, %v340
    %344 = vrot.lane.b32.xlu0 %v250, 64
    %v345 = vpop.permute.xlu0 %344
    %346 = vrot.lane.b32.xlu0 %v251, 64
    %v347 = vpop.permute.xlu0 %346
    %v351 = vsel %vm93, %v342, 0
    %v354 = vsel %vm93, %v343, 0
    %356 = vmatpush.bf16.msra.mxu0 0
    %357 = vmatpush.bf16.msra.mxu0 0
    %358 = vmatpush.bf16.msra.mxu0 0
    %359 = vmatpush.bf16.msra.mxu0 0
    %360 = vmatpush.bf16.msra.mxu0 0
    %361 = vmatpush.bf16.msra.mxu0 0
    %362 = vmatpush.bf16.msra.mxu0 %v347
    %363 = vmatpush.bf16.msra.mxu0 %v345
    %364 = vmatmul.bf16.gmra.mxu0 %v351
    %v365 = vpop.f32.mrf.mxu0
    %v366 = vadd.f32 0.0, %v365
    %v367 = vpop.f32.mrf.mxu0
    %v368 = vadd.f32 0.0, %v367
    %369 = vmatmul.bf16.gmra.mxu0 %v354
    %v370 = vpop.f32.mrf.mxu0
    %v371 = vadd.f32 0.0, %v370
    %v372 = vpop.f32.mrf.mxu0
    %v373 = vadd.f32 0.0, %v372
    %374 = vdwg.mxu0
    %375 = vrot.lane.b32.xlu0 %v250, 112
    %v376 = vpop.permute.xlu0 %375
    %377 = vrot.lane.b32.xlu0 %v251, 112
    %v378 = vpop.permute.xlu0 %377
    %379 = vrot.lane.b32.xlu0 %v250, 80
    %v380 = vpop.permute.xlu0 %379
    %381 = vrot.lane.b32.xlu0 %v251, 80
    %v382 = vpop.permute.xlu0 %381
    %v384 = vsel %vm258, %v376, 0
    %v387 = vsel %vm258, %v378, 0
    %v390 = vsel %vm258, %v380, 0
    %v393 = vsel %vm258, %v382, 0
    %395 = vmatpush.bf16.xpose.msra.mxu0 0
    %396 = vmatpush.bf16.xpose.msra.mxu0 0
    %397 = vmatpush.bf16.xpose.msra.mxu0 0
    %398 = vmatpush.bf16.xpose.msra.mxu0 0
    %399 = vmatpush.bf16.xpose.msra.mxu0 0
    %400 = vmatpush.bf16.xpose.msra.mxu0 0
    %401 = vmatpush.bf16.xpose.msra.mxu0 %v393
    %402 = vmatpush.bf16.xpose.msra.mxu0 %v390
    %403 = vmatmul.bf16.gmra.mxu0 %v384
    %v404 = vpop.f32.mrf.mxu0
    %v405 = vadd.f32 0.0, %v404
    %v406 = vpop.f32.mrf.mxu0
    %v407 = vadd.f32 0.0, %v406
    %408 = vmatmul.bf16.gmra.mxu0 %v387
    %v409 = vpop.f32.mrf.mxu0
    %v410 = vadd.f32 0.0, %v409
    %v411 = vpop.f32.mrf.mxu0
    %v412 = vadd.f32 0.0, %v411
    %413 = vdwg.mxu0
    %v414 = vmul.f32 %v405, 0.25
    %v415 = vmul.f32 %v407, 0.25
    %v416 = vmul.f32 %v410, 0.25
    %v417 = vmul.f32 %v412, 0.25
    %v418 = vadd.f32 %v414, %v87
    %v419 = vadd.f32 %v415, %v88
    %v420 = vadd.f32 %v416, %v89
    %v421 = vadd.f32 %v417, %v90
    %v422 = vsel %vm93, %v418, -inf
    %423 = vmax.xlane.f32.xlu0 %v422
    %v424 = vpop.xlane.xlu0 %423
    %v425 = vsel %vm93, %v419, -inf
    %426 = vmax.xlane.f32.xlu0 %v425
    %v427 = vpop.xlane.xlu0 %426
    %v428 = vsel %vm93, %v420, -inf
    %429 = vmax.xlane.f32.xlu0 %v428
    %v430 = vpop.xlane.xlu0 %429
    %v431 = vsel %vm93, %v421, -inf
    %432 = vmax.xlane.f32.xlu0 %v431
    %v433 = vpop.xlane.xlu0 %432
    %v434 = vsub.f32 %v418, %v424
    %v435 = vsub.f32 %v419, %v427
    %v436 = vsub.f32 %v420, %v430
    %v437 = vsub.f32 %v421, %v433
    %v438 = vmul.f32 %v434, 1.442695
    %v439 = vpow.pop %v438
    %v440 = vmul.f32 %v435, 1.442695
    %v441 = vpow.pop %v440
    %v442 = vmul.f32 %v436, 1.442695
    %v443 = vpow.pop %v442
    %v444 = vmul.f32 %v437, 1.442695
    %v445 = vpow.pop %v444
    %v446 = vsel %vm93, %v439, 0.0
    %447 = vadd.xlane.f32.xlu0 %v446
    %v448 = vpop.xlane.xlu0 %447
    %v449 = vsel %vm93, %v441, 0.0
    %450 = vadd.xlane.f32.xlu0 %v449
    %v451 = vpop.xlane.xlu0 %450
    %v452 = vsel %vm93, %v443, 0.0
    %453 = vadd.xlane.f32.xlu0 %v452
    %v454 = vpop.xlane.xlu0 %453
    %v455 = vsel %vm93, %v445, 0.0
    %456 = vadd.xlane.f32.xlu0 %v455
    %v457 = vpop.xlane.xlu0 %456
    %v458 = vrcp.pop %v448
    %v459 = vrcp.pop %v451
    %v460 = vrcp.pop %v454
    %v461 = vrcp.pop %v457
    %v462 = vmul.f32 %v439, %v458
    %v463 = vmul.f32 %v441, %v459
    %v464 = vmul.f32 %v443, %v460
    %v465 = vmul.f32 %v445, %v461
    %v466 = vpack.c.bf16 %v463, %v462
    %v467 = vpack.c.bf16 %v465, %v464
    %468 = vrot.lane.b32.xlu0 %v250, 48
    %v469 = vpop.permute.xlu0 %468
    %470 = vrot.lane.b32.xlu0 %v251, 48
    %v471 = vpop.permute.xlu0 %470
    %v475 = vsel %vm93, %v466, 0
    %v478 = vsel %vm93, %v467, 0
    %480 = vmatpush.bf16.msra.mxu0 0
    %481 = vmatpush.bf16.msra.mxu0 0
    %482 = vmatpush.bf16.msra.mxu0 0
    %483 = vmatpush.bf16.msra.mxu0 0
    %484 = vmatpush.bf16.msra.mxu0 0
    %485 = vmatpush.bf16.msra.mxu0 0
    %486 = vmatpush.bf16.msra.mxu0 %v471
    %487 = vmatpush.bf16.msra.mxu0 %v469
    %488 = vmatmul.bf16.gmra.mxu0 %v475
    %v489 = vpop.f32.mrf.mxu0
    %v490 = vadd.f32 0.0, %v489
    %v491 = vpop.f32.mrf.mxu0
    %v492 = vadd.f32 0.0, %v491
    %493 = vmatmul.bf16.gmra.mxu0 %v478
    %v494 = vpop.f32.mrf.mxu0
    %v495 = vadd.f32 0.0, %v494
    %v496 = vpop.f32.mrf.mxu0
    %v497 = vadd.f32 0.0, %v496
    %498 = vdwg.mxu0
    %503 = vrot.lane.b32.xlu0 %v490, 16
    %v504 = vpop.permute.xlu0 %503
    %505 = vrot.lane.b32.xlu0 %v492, 16
    %v506 = vpop.permute.xlu0 %505
    %507 = vrot.lane.b32.xlu0 %v495, 16
    %v508 = vpop.permute.xlu0 %507
    %509 = vrot.lane.b32.xlu0 %v497, 16
    %v510 = vpop.permute.xlu0 %509
    %v515 = vsel %vm258, %v366, %v504
    %v516 = vsel %vm258, %v368, %v506
    %v517 = vsel %vm258, %v371, %v508
    %v518 = vsel %vm258, %v373, %v510
    %v519 = vld [vmem:[%s17] sm:$0xf]
    %v520 = vld [vmem:[%s17 + $0x4] sm:$0xf]
    %v521 = vld [vmem:[%s17 + $0x8] sm:$0xf]
    %v522 = vld [vmem:[%s17 + $0xc] sm:$0xf]
    %v523 = vpack.c.bf16 %v516, %v515
    %v524 = vpack.c.bf16 %v518, %v517
    %v529 = vunpack.c.l.b16 %v519
    %v530 = vunpack.c.l.b16 %v520
    %v531 = vunpack.c.l.b16 %v521
    %v532 = vunpack.c.l.b16 %v522
    %v533 = vpack.c.b16 %v530, %v529
    %v534 = vpack.c.b16 %v532, %v531
    %v538 = vsel %vm93, %v523, 0
    %v541 = vsel %vm93, %v524, 0
    %543 = vmatpush.bf16.msra.mxu0 0
    %544 = vmatpush.bf16.msra.mxu0 0
    %545 = vmatpush.bf16.msra.mxu0 0
    %546 = vmatpush.bf16.msra.mxu0 0
    %547 = vmatpush.bf16.msra.mxu0 0
    %548 = vmatpush.bf16.msra.mxu0 0
    %549 = vmatpush.bf16.msra.mxu0 %v534
    %550 = vmatpush.bf16.msra.mxu0 %v533
    %551 = vmatmul.bf16.gmra.mxu0 %v538
    %v552 = vpop.f32.mrf.mxu0
    %v553 = vadd.f32 0.0, %v552
    %v554 = vpop.f32.mrf.mxu0
    %v555 = vadd.f32 0.0, %v554
    %556 = vmatmul.bf16.gmra.mxu0 %v541
    %v557 = vpop.f32.mrf.mxu0
    %v558 = vadd.f32 0.0, %v557
    %v559 = vpop.f32.mrf.mxu0
    %v560 = vadd.f32 0.0, %v559
    %561 = vdwg.mxu0
    %v562 = vadd.f32 %v83, %v553
    %v563 = vadd.f32 %v84, %v555
    %v564 = vadd.f32 %v85, %v558
    %v565 = vadd.f32 %v86, %v560
    %v566 = vld [vmem:[%s18] sm:$0x1]
    %v568 = vperm.slane %v566, 0
    %v570 = vadd.f32 %v562, %v568
    %v571 = vadd.f32 %v563, %v568
    %v572 = vadd.f32 %v564, %v568
    %v573 = vadd.f32 %v565, %v568
    %v574 = vld [vmem:[%s19] sm:$0x1]
    %v575 = vld [vmem:[%s20] sm:$0x1]
    %v576 = vsel %vm93, %v570, 0.0
    %577 = vadd.xlane.f32.xlu0 %v576
    %v578 = vpop.xlane.xlu0 %577
    %v579 = vsel %vm93, %v571, 0.0
    %580 = vadd.xlane.f32.xlu0 %v579
    %v581 = vpop.xlane.xlu0 %580
    %v582 = vsel %vm93, %v572, 0.0
    %583 = vadd.xlane.f32.xlu0 %v582
    %v584 = vpop.xlane.xlu0 %583
    %v585 = vsel %vm93, %v573, 0.0
    %586 = vadd.xlane.f32.xlu0 %v585
    %v587 = vpop.xlane.xlu0 %586
    %v588 = vmul.f32 %v578, %v112
    %v589 = vmul.f32 %v581, %v112
    %v590 = vmul.f32 %v584, %v112
    %v591 = vmul.f32 %v587, %v112
    %v592 = vsub.f32 %v570, %v588
    %v593 = vsub.f32 %v571, %v589
    %v594 = vsub.f32 %v572, %v590
    %v595 = vsub.f32 %v573, %v591
    %v596 = vmul.f32 %v592, %v592
    %v597 = vmul.f32 %v593, %v593
    %v598 = vmul.f32 %v594, %v594
    %v599 = vmul.f32 %v595, %v595
    %v600 = vsel %vm93, %v596, 0.0
    %601 = vadd.xlane.f32.xlu0 %v600
    %v602 = vpop.xlane.xlu0 %601
    %v603 = vsel %vm93, %v597, 0.0
    %604 = vadd.xlane.f32.xlu0 %v603
    %v605 = vpop.xlane.xlu0 %604
    %v606 = vsel %vm93, %v598, 0.0
    %607 = vadd.xlane.f32.xlu0 %v606
    %v608 = vpop.xlane.xlu0 %607
    %v609 = vsel %vm93, %v599, 0.0
    %610 = vadd.xlane.f32.xlu0 %v609
    %v611 = vpop.xlane.xlu0 %610
    %v612 = vmul.f32 %v602, %v112
    %v613 = vmul.f32 %v605, %v112
    %v614 = vmul.f32 %v608, %v112
    %v615 = vmul.f32 %v611, %v112
    %v616 = vadd.f32 %v612, 1e-05
    %v617 = vadd.f32 %v613, 1e-05
    %v618 = vadd.f32 %v614, 1e-05
    %v619 = vadd.f32 %v615, 1e-05
    %v620 = vrsqrt.pop %v616
    %v621 = vmul.f32 %v620, %v616
    %v622 = vmul.f32 %v621, %v620
    %v623 = vmul.f32 0.5, %v622
    %v624 = vsub.f32 1.5, %v623
    %v625 = vmul.f32 %v620, %v624
    %vm626 = vweird.f32 %v616
    %vm627 = vweird.f32 %v620
    %vm628 = vmor %vm626, %vm627
    %v629 = vsel %vm628, %v620, %v625
    %v630 = vrsqrt.pop %v617
    %v631 = vmul.f32 %v630, %v617
    %v632 = vmul.f32 %v631, %v630
    %v633 = vmul.f32 0.5, %v632
    %v634 = vsub.f32 1.5, %v633
    %v635 = vmul.f32 %v630, %v634
    %vm636 = vweird.f32 %v617
    %vm637 = vweird.f32 %v630
    %vm638 = vmor %vm636, %vm637
    %v639 = vsel %vm638, %v630, %v635
    %v640 = vrsqrt.pop %v618
    %v641 = vmul.f32 %v640, %v618
    %v642 = vmul.f32 %v641, %v640
    %v643 = vmul.f32 0.5, %v642
    %v644 = vsub.f32 1.5, %v643
    %v645 = vmul.f32 %v640, %v644
    %vm646 = vweird.f32 %v618
    %vm647 = vweird.f32 %v640
    %vm648 = vmor %vm646, %vm647
    %v649 = vsel %vm648, %v640, %v645
    %v650 = vrsqrt.pop %v619
    %v651 = vmul.f32 %v650, %v619
    %v652 = vmul.f32 %v651, %v650
    %v653 = vmul.f32 0.5, %v652
    %v654 = vsub.f32 1.5, %v653
    %v655 = vmul.f32 %v650, %v654
    %vm656 = vweird.f32 %v619
    %vm657 = vweird.f32 %v650
    %vm658 = vmor %vm656, %vm657
    %v659 = vsel %vm658, %v650, %v655
    %v660 = vmul.f32 %v592, %v629
    %v661 = vmul.f32 %v593, %v639
    %v662 = vmul.f32 %v594, %v649
    %v663 = vmul.f32 %v595, %v659
    %v665 = vperm.slane %v574, 0
    %v667 = vmul.f32 %v660, %v665
    %v668 = vmul.f32 %v661, %v665
    %v669 = vmul.f32 %v662, %v665
    %v670 = vmul.f32 %v663, %v665
    %v672 = vperm.slane %v575, 0
    %v674 = vadd.f32 %v667, %v672
    %v675 = vadd.f32 %v668, %v672
    %v676 = vadd.f32 %v669, %v672
    %v677 = vadd.f32 %v670, %v672
    %v678 = vld [vmem:[%s21] sm:$0xf]
    %v679 = vld [vmem:[%s21 + $0x4] sm:$0xf]
    %v680 = vld [vmem:[%s21 + $0x8] sm:$0xf]
    %v681 = vld [vmem:[%s21 + $0xc] sm:$0xf]
    %v682 = vpack.c.bf16 %v675, %v674
    %v683 = vpack.c.bf16 %v677, %v676
    %v684 = vld [vmem:[%s22] sm:$0x1]
    %v686 = vperm.slane %v684, 0
    %v692 = vunpack.c.l.b16 %v678
    %v693 = vunpack.c.l.b16 %v679
    %v694 = vunpack.c.l.b16 %v680
    %v695 = vunpack.c.l.b16 %v681
    %v696 = vpack.c.b16 %v693, %v692
    %v697 = vpack.c.b16 %v695, %v694
    %v701 = vsel %vm93, %v682, 0
    %v704 = vsel %vm93, %v683, 0
    %706 = vmatpush.bf16.msra.mxu0 0
    %707 = vmatpush.bf16.msra.mxu0 0
    %708 = vmatpush.bf16.msra.mxu0 0
    %709 = vmatpush.bf16.msra.mxu0 0
    %710 = vmatpush.bf16.msra.mxu0 0
    %711 = vmatpush.bf16.msra.mxu0 0
    %712 = vmatpush.bf16.msra.mxu0 %v697
    %713 = vmatpush.bf16.msra.mxu0 %v696
    %714 = vmatmul.bf16.gmra.mxu0 %v701
    %v715 = vpop.f32.mrf.mxu0
    %v716 = vadd.f32 %v686, %v715
    %v717 = vpop.f32.mrf.mxu0
    %v718 = vadd.f32 %v686, %v717
    %719 = vmatmul.bf16.gmra.mxu0 %v704
    %v720 = vpop.f32.mrf.mxu0
    %v721 = vadd.f32 %v686, %v720
    %v722 = vpop.f32.mrf.mxu0
    %v723 = vadd.f32 %v686, %v722
    %724 = vdwg.mxu0
    %v725 = vmul.f32 %v716, 1.702
    %v726 = vmul.f32 %v718, 1.702
    %v727 = vmul.f32 %v721, 1.702
    %v728 = vmul.f32 %v723, 1.702
    %v729 = vxor.u32 %v725, 2147483648
    %v730 = vxor.u32 %v726, 2147483648
    %v731 = vxor.u32 %v727, 2147483648
    %v732 = vxor.u32 %v728, 2147483648
    %v733 = vmul.f32 %v729, 1.442695
    %v734 = vpow.pop %v733
    %v735 = vmul.f32 %v730, 1.442695
    %v736 = vpow.pop %v735
    %v737 = vmul.f32 %v731, 1.442695
    %v738 = vpow.pop %v737
    %v739 = vmul.f32 %v732, 1.442695
    %v740 = vpow.pop %v739
    %v741 = vadd.f32 %v734, 1.0
    %v742 = vadd.f32 %v736, 1.0
    %v743 = vadd.f32 %v738, 1.0
    %v744 = vadd.f32 %v740, 1.0
    %v745 = vrcp.pop %v741
    %v746 = vmul.f32 %v741, %v745
    %v747 = vsub.f32 1.0, %v746
    %v748 = vmul.f32 %v745, %v747
    %v749 = vadd.f32 %v745, %v748
    %vm750 = vweird.f32 %v741
    %vm751 = vweird.f32 %v745
    %vm752 = vmor %vm750, %vm751
    %v753 = vsel %vm752, %v745, %v749
    %v754 = vand.u32 2147483647, %v741
    %vm755 = vcmp.eq.f32.partialorder %v754, 8.507059e+37
    %v756 = vand.u32 %v741, 2147483648
    %v757 = vor.u32 1.1754944e-38, %v756
    %v758 = vsel %vm755, %v757, %v753
    %v759 = vmul.f32 1.0, %v758
    %v760 = vrcp.pop %v742
    %v761 = vmul.f32 %v742, %v760
    %v762 = vsub.f32 1.0, %v761
    %v763 = vmul.f32 %v760, %v762
    %v764 = vadd.f32 %v760, %v763
    %vm765 = vweird.f32 %v742
    %vm766 = vweird.f32 %v760
    %vm767 = vmor %vm765, %vm766
    %v768 = vsel %vm767, %v760, %v764
    %v769 = vand.u32 2147483647, %v742
    %vm770 = vcmp.eq.f32.partialorder %v769, 8.507059e+37
    %v771 = vand.u32 %v742, 2147483648
    %v772 = vor.u32 1.1754944e-38, %v771
    %v773 = vsel %vm770, %v772, %v768
    %v774 = vmul.f32 1.0, %v773
    %v775 = vrcp.pop %v743
    %v776 = vmul.f32 %v743, %v775
    %v777 = vsub.f32 1.0, %v776
    %v778 = vmul.f32 %v775, %v777
    %v779 = vadd.f32 %v775, %v778
    %vm780 = vweird.f32 %v743
    %vm781 = vweird.f32 %v775
    %vm782 = vmor %vm780, %vm781
    %v783 = vsel %vm782, %v775, %v779
    %v784 = vand.u32 2147483647, %v743
    %vm785 = vcmp.eq.f32.partialorder %v784, 8.507059e+37
    %v786 = vand.u32 %v743, 2147483648
    %v787 = vor.u32 1.1754944e-38, %v786
    %v788 = vsel %vm785, %v787, %v783
    %v789 = vmul.f32 1.0, %v788
    %v790 = vrcp.pop %v744
    %v791 = vmul.f32 %v744, %v790
    %v792 = vsub.f32 1.0, %v791
    %v793 = vmul.f32 %v790, %v792
    %v794 = vadd.f32 %v790, %v793
    %vm795 = vweird.f32 %v744
    %vm796 = vweird.f32 %v790
    %vm797 = vmor %vm795, %vm796
    %v798 = vsel %vm797, %v790, %v794
    %v799 = vand.u32 2147483647, %v744
    %vm800 = vcmp.eq.f32.partialorder %v799, 8.507059e+37
    %v801 = vand.u32 %v744, 2147483648
    %v802 = vor.u32 1.1754944e-38, %v801
    %v803 = vsel %vm800, %v802, %v798
    %v804 = vmul.f32 1.0, %v803
    %v805 = vmul.f32 %v716, %v759
    %v806 = vmul.f32 %v718, %v774
    %v807 = vmul.f32 %v721, %v789
    %v808 = vmul.f32 %v723, %v804
    %v809 = vld [vmem:[%s23] sm:$0xf]
    %v810 = vld [vmem:[%s23 + $0x4] sm:$0xf]
    %v811 = vld [vmem:[%s23 + $0x8] sm:$0xf]
    %v812 = vld [vmem:[%s23 + $0xc] sm:$0xf]
    %v813 = vld [vmem:[%s23 + $0x10] sm:$0xf]
    %v814 = vld [vmem:[%s23 + $0x14] sm:$0xf]
    %v815 = vld [vmem:[%s23 + $0x18] sm:$0xf]
    %v816 = vld [vmem:[%s23 + $0x1c] sm:$0xf]
    %v817 = vld [vmem:[%s23 + $0x20] sm:$0xf]
    %v818 = vld [vmem:[%s23 + $0x24] sm:$0xf]
    %v819 = vld [vmem:[%s23 + $0x28] sm:$0xf]
    %v820 = vld [vmem:[%s23 + $0x2c] sm:$0xf]
    %v821 = vld [vmem:[%s23 + $0x30] sm:$0xf]
    %v822 = vld [vmem:[%s23 + $0x34] sm:$0xf]
    %v823 = vld [vmem:[%s23 + $0x38] sm:$0xf]
    %v824 = vld [vmem:[%s23 + $0x3c] sm:$0xf]
    %v825 = vpack.c.bf16 %v806, %v805
    %v826 = vpack.c.bf16 %v808, %v807
    %v843 = vunpack.c.l.b16 %v809
    %v844 = vunpack.c.l.b16 %v810
    %v845 = vunpack.c.l.b16 %v811
    %v846 = vunpack.c.l.b16 %v812
    %v847 = vunpack.c.l.b16 %v813
    %v848 = vunpack.c.l.b16 %v814
    %v849 = vunpack.c.l.b16 %v815
    %v850 = vunpack.c.l.b16 %v816
    %v851 = vunpack.c.l.b16 %v817
    %v852 = vunpack.c.l.b16 %v818
    %v853 = vunpack.c.l.b16 %v819
    %v854 = vunpack.c.l.b16 %v820
    %v855 = vunpack.c.l.b16 %v821
    %v856 = vunpack.c.l.b16 %v822
    %v857 = vunpack.c.l.b16 %v823
    %v858 = vunpack.c.l.b16 %v824
    %v859 = vpack.c.b16 %v844, %v843
    %v860 = vpack.c.b16 %v846, %v845
    %v861 = vpack.c.b16 %v848, %v847
    %v862 = vpack.c.b16 %v850, %v849
    %v863 = vpack.c.b16 %v852, %v851
    %v864 = vpack.c.b16 %v854, %v853
    %v865 = vpack.c.b16 %v856, %v855
    %v866 = vpack.c.b16 %v858, %v857
    %875 = vmatpush.bf16.msra.mxu0 %v866
    %876 = vmatpush.bf16.msra.mxu0 %v865
    %877 = vmatpush.bf16.msra.mxu0 %v864
    %878 = vmatpush.bf16.msra.mxu0 %v863
    %879 = vmatpush.bf16.msra.mxu0 %v862
    %880 = vmatpush.bf16.msra.mxu0 %v861
    %881 = vmatpush.bf16.msra.mxu0 %v860
    %882 = vmatpush.bf16.msra.mxu0 %v859
    %883 = vmatmul.bf16.gmra.mxu0 %v825
    %v884 = vpop.f32.mrf.mxu0
    %v885 = vadd.f32 0.0, %v884
    %v886 = vpop.f32.mrf.mxu0
    %v887 = vadd.f32 0.0, %v886
    %888 = vmatmul.bf16.gmra.mxu0 %v826
    %v889 = vpop.f32.mrf.mxu0
    %v890 = vadd.f32 0.0, %v889
    %v891 = vpop.f32.mrf.mxu0
    %v892 = vadd.f32 0.0, %v891
    %893 = vdwg.mxu0
    %v894 = vadd.f32 %v570, %v885
    %v895 = vadd.f32 %v571, %v887
    %v896 = vadd.f32 %v572, %v890
    %v897 = vadd.f32 %v573, %v892
    %v898 = vld [vmem:[%s24] sm:$0x1]
    %v900 = vperm.slane %v898, 0
    %v902 = vadd.f32 %v894, %v900
    %v903 = vadd.f32 %v895, %v900
    %v904 = vadd.f32 %v896, %v900
    %v905 = vadd.f32 %v897, %v900
    %s906 = scalar_lea.vmem %s13, 1
    %v907 = vld [vmem:[%s906] sm:$0x1]
    %s908 = scalar_lea.vmem %s14, 1
    %v909 = vld [vmem:[%s908] sm:$0x1]
    %v910 = vsel %vm93, %v902, 0.0
    %911 = vadd.xlane.f32.xlu0 %v910
    %v912 = vpop.xlane.xlu0 %911
    %v913 = vsel %vm93, %v903, 0.0
    %914 = vadd.xlane.f32.xlu0 %v913
    %v915 = vpop.xlane.xlu0 %914
    %v916 = vsel %vm93, %v904, 0.0
    %917 = vadd.xlane.f32.xlu0 %v916
    %v918 = vpop.xlane.xlu0 %917
    %v919 = vsel %vm93, %v905, 0.0
    %920 = vadd.xlane.f32.xlu0 %v919
    %v921 = vpop.xlane.xlu0 %920
    %v922 = vmul.f32 %v912, %v112
    %v923 = vmul.f32 %v915, %v112
    %v924 = vmul.f32 %v918, %v112
    %v925 = vmul.f32 %v921, %v112
    %v926 = vsub.f32 %v902, %v922
    %v927 = vsub.f32 %v903, %v923
    %v928 = vsub.f32 %v904, %v924
    %v929 = vsub.f32 %v905, %v925
    %v930 = vmul.f32 %v926, %v926
    %v931 = vmul.f32 %v927, %v927
    %v932 = vmul.f32 %v928, %v928
    %v933 = vmul.f32 %v929, %v929
    %v934 = vsel %vm93, %v930, 0.0
    %935 = vadd.xlane.f32.xlu0 %v934
    %v936 = vpop.xlane.xlu0 %935
    %v937 = vsel %vm93, %v931, 0.0
    %938 = vadd.xlane.f32.xlu0 %v937
    %v939 = vpop.xlane.xlu0 %938
    %v940 = vsel %vm93, %v932, 0.0
    %941 = vadd.xlane.f32.xlu0 %v940
    %v942 = vpop.xlane.xlu0 %941
    %v943 = vsel %vm93, %v933, 0.0
    %944 = vadd.xlane.f32.xlu0 %v943
    %v945 = vpop.xlane.xlu0 %944
    %v946 = vmul.f32 %v936, %v112
    %v947 = vmul.f32 %v939, %v112
    %v948 = vmul.f32 %v942, %v112
    %v949 = vmul.f32 %v945, %v112
    %v950 = vadd.f32 %v946, 1e-05
    %v951 = vadd.f32 %v947, 1e-05
    %v952 = vadd.f32 %v948, 1e-05
    %v953 = vadd.f32 %v949, 1e-05
    %v954 = vrsqrt.pop %v950
    %v955 = vmul.f32 %v954, %v950
    %v956 = vmul.f32 %v955, %v954
    %v957 = vmul.f32 0.5, %v956
    %v958 = vsub.f32 1.5, %v957
    %v959 = vmul.f32 %v954, %v958
    %vm960 = vweird.f32 %v950
    %vm961 = vweird.f32 %v954
    %vm962 = vmor %vm960, %vm961
    %v963 = vsel %vm962, %v954, %v959
    %v964 = vrsqrt.pop %v951
    %v965 = vmul.f32 %v964, %v951
    %v966 = vmul.f32 %v965, %v964
    %v967 = vmul.f32 0.5, %v966
    %v968 = vsub.f32 1.5, %v967
    %v969 = vmul.f32 %v964, %v968
    %vm970 = vweird.f32 %v951
    %vm971 = vweird.f32 %v964
    %vm972 = vmor %vm970, %vm971
    %v973 = vsel %vm972, %v964, %v969
    %v974 = vrsqrt.pop %v952
    %v975 = vmul.f32 %v974, %v952
    %v976 = vmul.f32 %v975, %v974
    %v977 = vmul.f32 0.5, %v976
    %v978 = vsub.f32 1.5, %v977
    %v979 = vmul.f32 %v974, %v978
    %vm980 = vweird.f32 %v952
    %vm981 = vweird.f32 %v974
    %vm982 = vmor %vm980, %vm981
    %v983 = vsel %vm982, %v974, %v979
    %v984 = vrsqrt.pop %v953
    %v985 = vmul.f32 %v984, %v953
    %v986 = vmul.f32 %v985, %v984
    %v987 = vmul.f32 0.5, %v986
    %v988 = vsub.f32 1.5, %v987
    %v989 = vmul.f32 %v984, %v988
    %vm990 = vweird.f32 %v953
    %vm991 = vweird.f32 %v984
    %vm992 = vmor %vm990, %vm991
    %v993 = vsel %vm992, %v984, %v989
    %v994 = vmul.f32 %v926, %v963
    %v995 = vmul.f32 %v927, %v973
    %v996 = vmul.f32 %v928, %v983
    %v997 = vmul.f32 %v929, %v993
    %v999 = vperm.slane %v907, 0
    %v1001 = vmul.f32 %v994, %v999
    %v1002 = vmul.f32 %v995, %v999
    %v1003 = vmul.f32 %v996, %v999
    %v1004 = vmul.f32 %v997, %v999
    %v1006 = vperm.slane %v909, 0
    %v1008 = vadd.f32 %v1001, %v1006
    %v1009 = vadd.f32 %v1002, %v1006
    %v1010 = vadd.f32 %v1003, %v1006
    %v1011 = vadd.f32 %v1004, %v1006
    %s1012 = scalar_lea.vmem %s15, 16
    %v1013 = vld [vmem:[%s1012] sm:$0xf]
    %v1014 = vld [vmem:[%s1012 + $0x4] sm:$0xf]
    %v1015 = vld [vmem:[%s1012 + $0x8] sm:$0xf]
    %v1016 = vld [vmem:[%s1012 + $0xc] sm:$0xf]
    %v1017 = vpack.c.bf16 %v1009, %v1008
    %v1018 = vpack.c.bf16 %v1011, %v1010
    %s1019 = scalar_lea.vmem %s16, 1
    %v1020 = vld [vmem:[%s1019] sm:$0x1]
    %v1022 = vperm.slane %v1020, 0
    %v1028 = vunpack.c.l.b16 %v1013
    %v1029 = vunpack.c.l.b16 %v1014
    %v1030 = vunpack.c.l.b16 %v1015
    %v1031 = vunpack.c.l.b16 %v1016
    %v1032 = vpack.c.b16 %v1029, %v1028
    %v1033 = vpack.c.b16 %v1031, %v1030
    %v1037 = vsel %vm93, %v1017, 0
    %v1040 = vsel %vm93, %v1018, 0
    %1042 = vmatpush.bf16.msra.mxu0 0
    %1043 = vmatpush.bf16.msra.mxu0 0
    %1044 = vmatpush.bf16.msra.mxu0 0
    %1045 = vmatpush.bf16.msra.mxu0 0
    %1046 = vmatpush.bf16.msra.mxu0 0
    %1047 = vmatpush.bf16.msra.mxu0 0
    %1048 = vmatpush.bf16.msra.mxu0 %v1033
    %1049 = vmatpush.bf16.msra.mxu0 %v1032
    %1050 = vmatmul.bf16.gmra.mxu0 %v1037
    %v1051 = vpop.f32.mrf.mxu0
    %v1052 = vadd.f32 %v1022, %v1051
    %v1053 = vpop.f32.mrf.mxu0
    %v1054 = vadd.f32 %v1022, %v1053
    %1055 = vmatmul.bf16.gmra.mxu0 %v1040
    %v1056 = vpop.f32.mrf.mxu0
    %v1057 = vadd.f32 %v1022, %v1056
    %v1058 = vpop.f32.mrf.mxu0
    %v1059 = vadd.f32 %v1022, %v1058
    %1060 = vdwg.mxu0
    %v1061 = vpack.c.bf16 %v1054, %v1052
    %v1062 = vpack.c.bf16 %v1059, %v1057
    %1065 = vrot.lane.b32.xlu0 %v1061, 96
    %v1066 = vpop.permute.xlu0 %1065
    %1067 = vrot.lane.b32.xlu0 %v1062, 96
    %v1068 = vpop.permute.xlu0 %1067
    %v1070 = vsel %vm258, %v1061, 0
    %v1073 = vsel %vm258, %v1062, 0
    %v1076 = vsel %vm258, %v1066, 0
    %v1079 = vsel %vm258, %v1068, 0
    %1081 = vmatpush.bf16.xpose.msra.mxu0 0
    %1082 = vmatpush.bf16.xpose.msra.mxu0 0
    %1083 = vmatpush.bf16.xpose.msra.mxu0 0
    %1084 = vmatpush.bf16.xpose.msra.mxu0 0
    %1085 = vmatpush.bf16.xpose.msra.mxu0 0
    %1086 = vmatpush.bf16.xpose.msra.mxu0 0
    %1087 = vmatpush.bf16.xpose.msra.mxu0 %v1079
    %1088 = vmatpush.bf16.xpose.msra.mxu0 %v1076
    %1089 = vmatmul.bf16.gmra.mxu0 %v1070
    %v1090 = vpop.f32.mrf.mxu0
    %v1091 = vadd.f32 0.0, %v1090
    %v1092 = vpop.f32.mrf.mxu0
    %v1093 = vadd.f32 0.0, %v1092
    %1094 = vmatmul.bf16.gmra.mxu0 %v1073
    %v1095 = vpop.f32.mrf.mxu0
    %v1096 = vadd.f32 0.0, %v1095
    %v1097 = vpop.f32.mrf.mxu0
    %v1098 = vadd.f32 0.0, %v1097
    %1099 = vdwg.mxu0
    %v1100 = vmul.f32 %v1091, 0.25
    %v1101 = vmul.f32 %v1093, 0.25
    %v1102 = vmul.f32 %v1096, 0.25
    %v1103 = vmul.f32 %v1098, 0.25
    %v1104 = vadd.f32 %v1100, %v87
    %v1105 = vadd.f32 %v1101, %v88
    %v1106 = vadd.f32 %v1102, %v89
    %v1107 = vadd.f32 %v1103, %v90
    %v1108 = vsel %vm93, %v1104, -inf
    %1109 = vmax.xlane.f32.xlu0 %v1108
    %v1110 = vpop.xlane.xlu0 %1109
    %v1111 = vsel %vm93, %v1105, -inf
    %1112 = vmax.xlane.f32.xlu0 %v1111
    %v1113 = vpop.xlane.xlu0 %1112
    %v1114 = vsel %vm93, %v1106, -inf
    %1115 = vmax.xlane.f32.xlu0 %v1114
    %v1116 = vpop.xlane.xlu0 %1115
    %v1117 = vsel %vm93, %v1107, -inf
    %1118 = vmax.xlane.f32.xlu0 %v1117
    %v1119 = vpop.xlane.xlu0 %1118
    %v1120 = vsub.f32 %v1104, %v1110
    %v1121 = vsub.f32 %v1105, %v1113
    %v1122 = vsub.f32 %v1106, %v1116
    %v1123 = vsub.f32 %v1107, %v1119
    %v1124 = vmul.f32 %v1120, 1.442695
    %v1125 = vpow.pop %v1124
    %v1126 = vmul.f32 %v1121, 1.442695
    %v1127 = vpow.pop %v1126
    %v1128 = vmul.f32 %v1122, 1.442695
    %v1129 = vpow.pop %v1128
    %v1130 = vmul.f32 %v1123, 1.442695
    %v1131 = vpow.pop %v1130
    %v1132 = vsel %vm93, %v1125, 0.0
    %1133 = vadd.xlane.f32.xlu0 %v1132
    %v1134 = vpop.xlane.xlu0 %1133
    %v1135 = vsel %vm93, %v1127, 0.0
    %1136 = vadd.xlane.f32.xlu0 %v1135
    %v1137 = vpop.xlane.xlu0 %1136
    %v1138 = vsel %vm93, %v1129, 0.0
    %1139 = vadd.xlane.f32.xlu0 %v1138
    %v1140 = vpop.xlane.xlu0 %1139
    %v1141 = vsel %vm93, %v1131, 0.0
    %1142 = vadd.xlane.f32.xlu0 %v1141
    %v1143 = vpop.xlane.xlu0 %1142
    %v1144 = vrcp.pop %v1134
    %v1145 = vrcp.pop %v1137
    %v1146 = vrcp.pop %v1140
    %v1147 = vrcp.pop %v1143
    %v1148 = vmul.f32 %v1125, %v1144
    %v1149 = vmul.f32 %v1127, %v1145
    %v1150 = vmul.f32 %v1129, %v1146
    %v1151 = vmul.f32 %v1131, %v1147
    %v1152 = vpack.c.bf16 %v1149, %v1148
    %v1153 = vpack.c.bf16 %v1151, %v1150
    %1154 = vrot.lane.b32.xlu0 %v1061, 64
    %v1155 = vpop.permute.xlu0 %1154
    %1156 = vrot.lane.b32.xlu0 %v1062, 64
    %v1157 = vpop.permute.xlu0 %1156
    %v1161 = vsel %vm93, %v1152, 0
    %v1164 = vsel %vm93, %v1153, 0
    %1166 = vmatpush.bf16.msra.mxu0 0
    %1167 = vmatpush.bf16.msra.mxu0 0
    %1168 = vmatpush.bf16.msra.mxu0 0
    %1169 = vmatpush.bf16.msra.mxu0 0
    %1170 = vmatpush.bf16.msra.mxu0 0
    %1171 = vmatpush.bf16.msra.mxu0 0
    %1172 = vmatpush.bf16.msra.mxu0 %v1157
    %1173 = vmatpush.bf16.msra.mxu0 %v1155
    %1174 = vmatmul.bf16.gmra.mxu0 %v1161
    %v1175 = vpop.f32.mrf.mxu0
    %v1176 = vadd.f32 0.0, %v1175
    %v1177 = vpop.f32.mrf.mxu0
    %v1178 = vadd.f32 0.0, %v1177
    %1179 = vmatmul.bf16.gmra.mxu0 %v1164
    %v1180 = vpop.f32.mrf.mxu0
    %v1181 = vadd.f32 0.0, %v1180
    %v1182 = vpop.f32.mrf.mxu0
    %v1183 = vadd.f32 0.0, %v1182
    %1184 = vdwg.mxu0
    %1185 = vrot.lane.b32.xlu0 %v1061, 112
    %v1186 = vpop.permute.xlu0 %1185
    %1187 = vrot.lane.b32.xlu0 %v1062, 112
    %v1188 = vpop.permute.xlu0 %1187
    %1189 = vrot.lane.b32.xlu0 %v1061, 80
    %v1190 = vpop.permute.xlu0 %1189
    %1191 = vrot.lane.b32.xlu0 %v1062, 80
    %v1192 = vpop.permute.xlu0 %1191
    %v1194 = vsel %vm258, %v1186, 0
    %v1197 = vsel %vm258, %v1188, 0
    %v1200 = vsel %vm258, %v1190, 0
    %v1203 = vsel %vm258, %v1192, 0
    %1205 = vmatpush.bf16.xpose.msra.mxu0 0
    %1206 = vmatpush.bf16.xpose.msra.mxu0 0
    %1207 = vmatpush.bf16.xpose.msra.mxu0 0
    %1208 = vmatpush.bf16.xpose.msra.mxu0 0
    %1209 = vmatpush.bf16.xpose.msra.mxu0 0
    %1210 = vmatpush.bf16.xpose.msra.mxu0 0
    %1211 = vmatpush.bf16.xpose.msra.mxu0 %v1203
    %1212 = vmatpush.bf16.xpose.msra.mxu0 %v1200
    %1213 = vmatmul.bf16.gmra.mxu0 %v1194
    %v1214 = vpop.f32.mrf.mxu0
    %v1215 = vadd.f32 0.0, %v1214
    %v1216 = vpop.f32.mrf.mxu0
    %v1217 = vadd.f32 0.0, %v1216
    %1218 = vmatmul.bf16.gmra.mxu0 %v1197
    %v1219 = vpop.f32.mrf.mxu0
    %v1220 = vadd.f32 0.0, %v1219
    %v1221 = vpop.f32.mrf.mxu0
    %v1222 = vadd.f32 0.0, %v1221
    %1223 = vdwg.mxu0
    %v1224 = vmul.f32 %v1215, 0.25
    %v1225 = vmul.f32 %v1217, 0.25
    %v1226 = vmul.f32 %v1220, 0.25
    %v1227 = vmul.f32 %v1222, 0.25
    %v1228 = vadd.f32 %v1224, %v87
    %v1229 = vadd.f32 %v1225, %v88
    %v1230 = vadd.f32 %v1226, %v89
    %v1231 = vadd.f32 %v1227, %v90
    %v1232 = vsel %vm93, %v1228, -inf
    %1233 = vmax.xlane.f32.xlu0 %v1232
    %v1234 = vpop.xlane.xlu0 %1233
    %v1235 = vsel %vm93, %v1229, -inf
    %1236 = vmax.xlane.f32.xlu0 %v1235
    %v1237 = vpop.xlane.xlu0 %1236
    %v1238 = vsel %vm93, %v1230, -inf
    %1239 = vmax.xlane.f32.xlu0 %v1238
    %v1240 = vpop.xlane.xlu0 %1239
    %v1241 = vsel %vm93, %v1231, -inf
    %1242 = vmax.xlane.f32.xlu0 %v1241
    %v1243 = vpop.xlane.xlu0 %1242
    %v1244 = vsub.f32 %v1228, %v1234
    %v1245 = vsub.f32 %v1229, %v1237
    %v1246 = vsub.f32 %v1230, %v1240
    %v1247 = vsub.f32 %v1231, %v1243
    %v1248 = vmul.f32 %v1244, 1.442695
    %v1249 = vpow.pop %v1248
    %v1250 = vmul.f32 %v1245, 1.442695
    %v1251 = vpow.pop %v1250
    %v1252 = vmul.f32 %v1246, 1.442695
    %v1253 = vpow.pop %v1252
    %v1254 = vmul.f32 %v1247, 1.442695
    %v1255 = vpow.pop %v1254
    %v1256 = vsel %vm93, %v1249, 0.0
    %1257 = vadd.xlane.f32.xlu0 %v1256
    %v1258 = vpop.xlane.xlu0 %1257
    %v1259 = vsel %vm93, %v1251, 0.0
    %1260 = vadd.xlane.f32.xlu0 %v1259
    %v1261 = vpop.xlane.xlu0 %1260
    %v1262 = vsel %vm93, %v1253, 0.0
    %1263 = vadd.xlane.f32.xlu0 %v1262
    %v1264 = vpop.xlane.xlu0 %1263
    %v1265 = vsel %vm93, %v1255, 0.0
    %1266 = vadd.xlane.f32.xlu0 %v1265
    %v1267 = vpop.xlane.xlu0 %1266
    %v1268 = vrcp.pop %v1258
    %v1269 = vrcp.pop %v1261
    %v1270 = vrcp.pop %v1264
    %v1271 = vrcp.pop %v1267
    %v1272 = vmul.f32 %v1249, %v1268
    %v1273 = vmul.f32 %v1251, %v1269
    %v1274 = vmul.f32 %v1253, %v1270
    %v1275 = vmul.f32 %v1255, %v1271
    %v1276 = vpack.c.bf16 %v1273, %v1272
    %v1277 = vpack.c.bf16 %v1275, %v1274
    %1278 = vrot.lane.b32.xlu0 %v1061, 48
    %v1279 = vpop.permute.xlu0 %1278
    %1280 = vrot.lane.b32.xlu0 %v1062, 48
    %v1281 = vpop.permute.xlu0 %1280
    %v1285 = vsel %vm93, %v1276, 0
    %v1288 = vsel %vm93, %v1277, 0
    %1290 = vmatpush.bf16.msra.mxu0 0
    %1291 = vmatpush.bf16.msra.mxu0 0
    %1292 = vmatpush.bf16.msra.mxu0 0
    %1293 = vmatpush.bf16.msra.mxu0 0
    %1294 = vmatpush.bf16.msra.mxu0 0
    %1295 = vmatpush.bf16.msra.mxu0 0
    %1296 = vmatpush.bf16.msra.mxu0 %v1281
    %1297 = vmatpush.bf16.msra.mxu0 %v1279
    %1298 = vmatmul.bf16.gmra.mxu0 %v1285
    %v1299 = vpop.f32.mrf.mxu0
    %v1300 = vadd.f32 0.0, %v1299
    %v1301 = vpop.f32.mrf.mxu0
    %v1302 = vadd.f32 0.0, %v1301
    %1303 = vmatmul.bf16.gmra.mxu0 %v1288
    %v1304 = vpop.f32.mrf.mxu0
    %v1305 = vadd.f32 0.0, %v1304
    %v1306 = vpop.f32.mrf.mxu0
    %v1307 = vadd.f32 0.0, %v1306
    %1308 = vdwg.mxu0
    %1313 = vrot.lane.b32.xlu0 %v1300, 16
    %v1314 = vpop.permute.xlu0 %1313
    %1315 = vrot.lane.b32.xlu0 %v1302, 16
    %v1316 = vpop.permute.xlu0 %1315
    %1317 = vrot.lane.b32.xlu0 %v1305, 16
    %v1318 = vpop.permute.xlu0 %1317
    %1319 = vrot.lane.b32.xlu0 %v1307, 16
    %v1320 = vpop.permute.xlu0 %1319
    %v1325 = vsel %vm258, %v1176, %v1314
    %v1326 = vsel %vm258, %v1178, %v1316
    %v1327 = vsel %vm258, %v1181, %v1318
    %v1328 = vsel %vm258, %v1183, %v1320
    %s1329 = scalar_lea.vmem %s17, 16
    %v1330 = vld [vmem:[%s1329] sm:$0xf]
    %v1331 = vld [vmem:[%s1329 + $0x4] sm:$0xf]
    %v1332 = vld [vmem:[%s1329 + $0x8] sm:$0xf]
    %v1333 = vld [vmem:[%s1329 + $0xc] sm:$0xf]
    %v1334 = vpack.c.bf16 %v1326, %v1325
    %v1335 = vpack.c.bf16 %v1328, %v1327
    %v1340 = vunpack.c.l.b16 %v1330
    %v1341 = vunpack.c.l.b16 %v1331
    %v1342 = vunpack.c.l.b16 %v1332
    %v1343 = vunpack.c.l.b16 %v1333
    %v1344 = vpack.c.b16 %v1341, %v1340
    %v1345 = vpack.c.b16 %v1343, %v1342
    %v1349 = vsel %vm93, %v1334, 0
    %v1352 = vsel %vm93, %v1335, 0
    %1354 = vmatpush.bf16.msra.mxu0 0
    %1355 = vmatpush.bf16.msra.mxu0 0
    %1356 = vmatpush.bf16.msra.mxu0 0
    %1357 = vmatpush.bf16.msra.mxu0 0
    %1358 = vmatpush.bf16.msra.mxu0 0
    %1359 = vmatpush.bf16.msra.mxu0 0
    %1360 = vmatpush.bf16.msra.mxu0 %v1345
    %1361 = vmatpush.bf16.msra.mxu0 %v1344
    %1362 = vmatmul.bf16.gmra.mxu0 %v1349
    %v1363 = vpop.f32.mrf.mxu0
    %v1364 = vadd.f32 0.0, %v1363
    %v1365 = vpop.f32.mrf.mxu0
    %v1366 = vadd.f32 0.0, %v1365
    %1367 = vmatmul.bf16.gmra.mxu0 %v1352
    %v1368 = vpop.f32.mrf.mxu0
    %v1369 = vadd.f32 0.0, %v1368
    %v1370 = vpop.f32.mrf.mxu0
    %v1371 = vadd.f32 0.0, %v1370
    %1372 = vdwg.mxu0
    %v1373 = vadd.f32 %v902, %v1364
    %v1374 = vadd.f32 %v903, %v1366
    %v1375 = vadd.f32 %v904, %v1369
    %v1376 = vadd.f32 %v905, %v1371
    %s1377 = scalar_lea.vmem %s18, 1
    %v1378 = vld [vmem:[%s1377] sm:$0x1]
    %v1380 = vperm.slane %v1378, 0
    %v1382 = vadd.f32 %v1373, %v1380
    %v1383 = vadd.f32 %v1374, %v1380
    %v1384 = vadd.f32 %v1375, %v1380
    %v1385 = vadd.f32 %v1376, %v1380
    %s1386 = scalar_lea.vmem %s19, 1
    %v1387 = vld [vmem:[%s1386] sm:$0x1]
    %s1388 = scalar_lea.vmem %s20, 1
    %v1389 = vld [vmem:[%s1388] sm:$0x1]
    %v1390 = vsel %vm93, %v1382, 0.0
    %1391 = vadd.xlane.f32.xlu0 %v1390
    %v1392 = vpop.xlane.xlu0 %1391
    %v1393 = vsel %vm93, %v1383, 0.0
    %1394 = vadd.xlane.f32.xlu0 %v1393
    %v1395 = vpop.xlane.xlu0 %1394
    %v1396 = vsel %vm93, %v1384, 0.0
    %1397 = vadd.xlane.f32.xlu0 %v1396
    %v1398 = vpop.xlane.xlu0 %1397
    %v1399 = vsel %vm93, %v1385, 0.0
    %1400 = vadd.xlane.f32.xlu0 %v1399
    %v1401 = vpop.xlane.xlu0 %1400
    %v1402 = vmul.f32 %v1392, %v112
    %v1403 = vmul.f32 %v1395, %v112
    %v1404 = vmul.f32 %v1398, %v112
    %v1405 = vmul.f32 %v1401, %v112
    %v1406 = vsub.f32 %v1382, %v1402
    %v1407 = vsub.f32 %v1383, %v1403
    %v1408 = vsub.f32 %v1384, %v1404
    %v1409 = vsub.f32 %v1385, %v1405
    %v1410 = vmul.f32 %v1406, %v1406
    %v1411 = vmul.f32 %v1407, %v1407
    %v1412 = vmul.f32 %v1408, %v1408
    %v1413 = vmul.f32 %v1409, %v1409
    %v1414 = vsel %vm93, %v1410, 0.0
    %1415 = vadd.xlane.f32.xlu0 %v1414
    %v1416 = vpop.xlane.xlu0 %1415
    %v1417 = vsel %vm93, %v1411, 0.0
    %1418 = vadd.xlane.f32.xlu0 %v1417
    %v1419 = vpop.xlane.xlu0 %1418
    %v1420 = vsel %vm93, %v1412, 0.0
    %1421 = vadd.xlane.f32.xlu0 %v1420
    %v1422 = vpop.xlane.xlu0 %1421
    %v1423 = vsel %vm93, %v1413, 0.0
    %1424 = vadd.xlane.f32.xlu0 %v1423
    %v1425 = vpop.xlane.xlu0 %1424
    %v1426 = vmul.f32 %v1416, %v112
    %v1427 = vmul.f32 %v1419, %v112
    %v1428 = vmul.f32 %v1422, %v112
    %v1429 = vmul.f32 %v1425, %v112
    %v1430 = vadd.f32 %v1426, 1e-05
    %v1431 = vadd.f32 %v1427, 1e-05
    %v1432 = vadd.f32 %v1428, 1e-05
    %v1433 = vadd.f32 %v1429, 1e-05
    %v1434 = vrsqrt.pop %v1430
    %v1435 = vmul.f32 %v1434, %v1430
    %v1436 = vmul.f32 %v1435, %v1434
    %v1437 = vmul.f32 0.5, %v1436
    %v1438 = vsub.f32 1.5, %v1437
    %v1439 = vmul.f32 %v1434, %v1438
    %vm1440 = vweird.f32 %v1430
    %vm1441 = vweird.f32 %v1434
    %vm1442 = vmor %vm1440, %vm1441
    %v1443 = vsel %vm1442, %v1434, %v1439
    %v1444 = vrsqrt.pop %v1431
    %v1445 = vmul.f32 %v1444, %v1431
    %v1446 = vmul.f32 %v1445, %v1444
    %v1447 = vmul.f32 0.5, %v1446
    %v1448 = vsub.f32 1.5, %v1447
    %v1449 = vmul.f32 %v1444, %v1448
    %vm1450 = vweird.f32 %v1431
    %vm1451 = vweird.f32 %v1444
    %vm1452 = vmor %vm1450, %vm1451
    %v1453 = vsel %vm1452, %v1444, %v1449
    %v1454 = vrsqrt.pop %v1432
    %v1455 = vmul.f32 %v1454, %v1432
    %v1456 = vmul.f32 %v1455, %v1454
    %v1457 = vmul.f32 0.5, %v1456
    %v1458 = vsub.f32 1.5, %v1457
    %v1459 = vmul.f32 %v1454, %v1458
    %vm1460 = vweird.f32 %v1432
    %vm1461 = vweird.f32 %v1454
    %vm1462 = vmor %vm1460, %vm1461
    %v1463 = vsel %vm1462, %v1454, %v1459
    %v1464 = vrsqrt.pop %v1433
    %v1465 = vmul.f32 %v1464, %v1433
    %v1466 = vmul.f32 %v1465, %v1464
    %v1467 = vmul.f32 0.5, %v1466
    %v1468 = vsub.f32 1.5, %v1467
    %v1469 = vmul.f32 %v1464, %v1468
    %vm1470 = vweird.f32 %v1433
    %vm1471 = vweird.f32 %v1464
    %vm1472 = vmor %vm1470, %vm1471
    %v1473 = vsel %vm1472, %v1464, %v1469
    %v1474 = vmul.f32 %v1406, %v1443
    %v1475 = vmul.f32 %v1407, %v1453
    %v1476 = vmul.f32 %v1408, %v1463
    %v1477 = vmul.f32 %v1409, %v1473
    %v1479 = vperm.slane %v1387, 0
    %v1481 = vmul.f32 %v1474, %v1479
    %v1482 = vmul.f32 %v1475, %v1479
    %v1483 = vmul.f32 %v1476, %v1479
    %v1484 = vmul.f32 %v1477, %v1479
    %v1486 = vperm.slane %v1389, 0
    %v1488 = vadd.f32 %v1481, %v1486
    %v1489 = vadd.f32 %v1482, %v1486
    %v1490 = vadd.f32 %v1483, %v1486
    %v1491 = vadd.f32 %v1484, %v1486
    %s1492 = scalar_lea.vmem %s21, 16
    %v1493 = vld [vmem:[%s1492] sm:$0xf]
    %v1494 = vld [vmem:[%s1492 + $0x4] sm:$0xf]
    %v1495 = vld [vmem:[%s1492 + $0x8] sm:$0xf]
    %v1496 = vld [vmem:[%s1492 + $0xc] sm:$0xf]
    %v1497 = vpack.c.bf16 %v1489, %v1488
    %v1498 = vpack.c.bf16 %v1491, %v1490
    %s1499 = scalar_lea.vmem %s22, 1
    %v1500 = vld [vmem:[%s1499] sm:$0x1]
    %v1502 = vperm.slane %v1500, 0
    %v1508 = vunpack.c.l.b16 %v1493
    %v1509 = vunpack.c.l.b16 %v1494
    %v1510 = vunpack.c.l.b16 %v1495
    %v1511 = vunpack.c.l.b16 %v1496
    %v1512 = vpack.c.b16 %v1509, %v1508
    %v1513 = vpack.c.b16 %v1511, %v1510
    %v1517 = vsel %vm93, %v1497, 0
    %v1520 = vsel %vm93, %v1498, 0
    %1522 = vmatpush.bf16.msra.mxu0 0
    %1523 = vmatpush.bf16.msra.mxu0 0
    %1524 = vmatpush.bf16.msra.mxu0 0
    %1525 = vmatpush.bf16.msra.mxu0 0
    %1526 = vmatpush.bf16.msra.mxu0 0
    %1527 = vmatpush.bf16.msra.mxu0 0
    %1528 = vmatpush.bf16.msra.mxu0 %v1513
    %1529 = vmatpush.bf16.msra.mxu0 %v1512
    %1530 = vmatmul.bf16.gmra.mxu0 %v1517
    %v1531 = vpop.f32.mrf.mxu0
    %v1532 = vadd.f32 %v1502, %v1531
    %v1533 = vpop.f32.mrf.mxu0
    %v1534 = vadd.f32 %v1502, %v1533
    %1535 = vmatmul.bf16.gmra.mxu0 %v1520
    %v1536 = vpop.f32.mrf.mxu0
    %v1537 = vadd.f32 %v1502, %v1536
    %v1538 = vpop.f32.mrf.mxu0
    %v1539 = vadd.f32 %v1502, %v1538
    %1540 = vdwg.mxu0
    %v1541 = vmul.f32 %v1532, 1.702
    %v1542 = vmul.f32 %v1534, 1.702
    %v1543 = vmul.f32 %v1537, 1.702
    %v1544 = vmul.f32 %v1539, 1.702
    %v1545 = vxor.u32 %v1541, 2147483648
    %v1546 = vxor.u32 %v1542, 2147483648
    %v1547 = vxor.u32 %v1543, 2147483648
    %v1548 = vxor.u32 %v1544, 2147483648
    %v1549 = vmul.f32 %v1545, 1.442695
    %v1550 = vpow.pop %v1549
    %v1551 = vmul.f32 %v1546, 1.442695
    %v1552 = vpow.pop %v1551
    %v1553 = vmul.f32 %v1547, 1.442695
    %v1554 = vpow.pop %v1553
    %v1555 = vmul.f32 %v1548, 1.442695
    %v1556 = vpow.pop %v1555
    %v1557 = vadd.f32 %v1550, 1.0
    %v1558 = vadd.f32 %v1552, 1.0
    %v1559 = vadd.f32 %v1554, 1.0
    %v1560 = vadd.f32 %v1556, 1.0
    %v1561 = vrcp.pop %v1557
    %v1562 = vmul.f32 %v1557, %v1561
    %v1563 = vsub.f32 1.0, %v1562
    %v1564 = vmul.f32 %v1561, %v1563
    %v1565 = vadd.f32 %v1561, %v1564
    %vm1566 = vweird.f32 %v1557
    %vm1567 = vweird.f32 %v1561
    %vm1568 = vmor %vm1566, %vm1567
    %v1569 = vsel %vm1568, %v1561, %v1565
    %v1570 = vand.u32 2147483647, %v1557
    %vm1571 = vcmp.eq.f32.partialorder %v1570, 8.507059e+37
    %v1572 = vand.u32 %v1557, 2147483648
    %v1573 = vor.u32 1.1754944e-38, %v1572
    %v1574 = vsel %vm1571, %v1573, %v1569
    %v1575 = vmul.f32 1.0, %v1574
    %v1576 = vrcp.pop %v1558
    %v1577 = vmul.f32 %v1558, %v1576
    %v1578 = vsub.f32 1.0, %v1577
    %v1579 = vmul.f32 %v1576, %v1578
    %v1580 = vadd.f32 %v1576, %v1579
    %vm1581 = vweird.f32 %v1558
    %vm1582 = vweird.f32 %v1576
    %vm1583 = vmor %vm1581, %vm1582
    %v1584 = vsel %vm1583, %v1576, %v1580
    %v1585 = vand.u32 2147483647, %v1558
    %vm1586 = vcmp.eq.f32.partialorder %v1585, 8.507059e+37
    %v1587 = vand.u32 %v1558, 2147483648
    %v1588 = vor.u32 1.1754944e-38, %v1587
    %v1589 = vsel %vm1586, %v1588, %v1584
    %v1590 = vmul.f32 1.0, %v1589
    %v1591 = vrcp.pop %v1559
    %v1592 = vmul.f32 %v1559, %v1591
    %v1593 = vsub.f32 1.0, %v1592
    %v1594 = vmul.f32 %v1591, %v1593
    %v1595 = vadd.f32 %v1591, %v1594
    %vm1596 = vweird.f32 %v1559
    %vm1597 = vweird.f32 %v1591
    %vm1598 = vmor %vm1596, %vm1597
    %v1599 = vsel %vm1598, %v1591, %v1595
    %v1600 = vand.u32 2147483647, %v1559
    %vm1601 = vcmp.eq.f32.partialorder %v1600, 8.507059e+37
    %v1602 = vand.u32 %v1559, 2147483648
    %v1603 = vor.u32 1.1754944e-38, %v1602
    %v1604 = vsel %vm1601, %v1603, %v1599
    %v1605 = vmul.f32 1.0, %v1604
    %v1606 = vrcp.pop %v1560
    %v1607 = vmul.f32 %v1560, %v1606
    %v1608 = vsub.f32 1.0, %v1607
    %v1609 = vmul.f32 %v1606, %v1608
    %v1610 = vadd.f32 %v1606, %v1609
    %vm1611 = vweird.f32 %v1560
    %vm1612 = vweird.f32 %v1606
    %vm1613 = vmor %vm1611, %vm1612
    %v1614 = vsel %vm1613, %v1606, %v1610
    %v1615 = vand.u32 2147483647, %v1560
    %vm1616 = vcmp.eq.f32.partialorder %v1615, 8.507059e+37
    %v1617 = vand.u32 %v1560, 2147483648
    %v1618 = vor.u32 1.1754944e-38, %v1617
    %v1619 = vsel %vm1616, %v1618, %v1614
    %v1620 = vmul.f32 1.0, %v1619
    %v1621 = vmul.f32 %v1532, %v1575
    %v1622 = vmul.f32 %v1534, %v1590
    %v1623 = vmul.f32 %v1537, %v1605
    %v1624 = vmul.f32 %v1539, %v1620
    %s1625 = scalar_lea.vmem %s23, 64
    %v1626 = vld [vmem:[%s1625] sm:$0xf]
    %v1627 = vld [vmem:[%s1625 + $0x4] sm:$0xf]
    %v1628 = vld [vmem:[%s1625 + $0x8] sm:$0xf]
    %v1629 = vld [vmem:[%s1625 + $0xc] sm:$0xf]
    %v1630 = vld [vmem:[%s1625 + $0x10] sm:$0xf]
    %v1631 = vld [vmem:[%s1625 + $0x14] sm:$0xf]
    %v1632 = vld [vmem:[%s1625 + $0x18] sm:$0xf]
    %v1633 = vld [vmem:[%s1625 + $0x1c] sm:$0xf]
    %v1634 = vld [vmem:[%s1625 + $0x20] sm:$0xf]
    %v1635 = vld [vmem:[%s1625 + $0x24] sm:$0xf]
    %v1636 = vld [vmem:[%s1625 + $0x28] sm:$0xf]
    %v1637 = vld [vmem:[%s1625 + $0x2c] sm:$0xf]
    %v1638 = vld [vmem:[%s1625 + $0x30] sm:$0xf]
    %v1639 = vld [vmem:[%s1625 + $0x34] sm:$0xf]
    %v1640 = vld [vmem:[%s1625 + $0x38] sm:$0xf]
    %v1641 = vld [vmem:[%s1625 + $0x3c] sm:$0xf]
    %v1642 = vpack.c.bf16 %v1622, %v1621
    %v1643 = vpack.c.bf16 %v1624, %v1623
    %v1660 = vunpack.c.l.b16 %v1626
    %v1661 = vunpack.c.l.b16 %v1627
    %v1662 = vunpack.c.l.b16 %v1628
    %v1663 = vunpack.c.l.b16 %v1629
    %v1664 = vunpack.c.l.b16 %v1630
    %v1665 = vunpack.c.l.b16 %v1631
    %v1666 = vunpack.c.l.b16 %v1632
    %v1667 = vunpack.c.l.b16 %v1633
    %v1668 = vunpack.c.l.b16 %v1634
    %v1669 = vunpack.c.l.b16 %v1635
    %v1670 = vunpack.c.l.b16 %v1636
    %v1671 = vunpack.c.l.b16 %v1637
    %v1672 = vunpack.c.l.b16 %v1638
    %v1673 = vunpack.c.l.b16 %v1639
    %v1674 = vunpack.c.l.b16 %v1640
    %v1675 = vunpack.c.l.b16 %v1641
    %v1676 = vpack.c.b16 %v1661, %v1660
    %v1677 = vpack.c.b16 %v1663, %v1662
    %v1678 = vpack.c.b16 %v1665, %v1664
    %v1679 = vpack.c.b16 %v1667, %v1666
    %v1680 = vpack.c.b16 %v1669, %v1668
    %v1681 = vpack.c.b16 %v1671, %v1670
    %v1682 = vpack.c.b16 %v1673, %v1672
    %v1683 = vpack.c.b16 %v1675, %v1674
    %1692 = vmatpush.bf16.msra.mxu0 %v1683
    %1693 = vmatpush.bf16.msra.mxu0 %v1682
    %1694 = vmatpush.bf16.msra.mxu0 %v1681
    %1695 = vmatpush.bf16.msra.mxu0 %v1680
    %1696 = vmatpush.bf16.msra.mxu0 %v1679
    %1697 = vmatpush.bf16.msra.mxu0 %v1678
    %1698 = vmatpush.bf16.msra.mxu0 %v1677
    %1699 = vmatpush.bf16.msra.mxu0 %v1676
    %1700 = vmatmul.bf16.gmra.mxu0 %v1642
    %v1701 = vpop.f32.mrf.mxu0
    %v1702 = vadd.f32 0.0, %v1701
    %v1703 = vpop.f32.mrf.mxu0
    %v1704 = vadd.f32 0.0, %v1703
    %1705 = vmatmul.bf16.gmra.mxu0 %v1643
    %v1706 = vpop.f32.mrf.mxu0
    %v1707 = vadd.f32 0.0, %v1706
    %v1708 = vpop.f32.mrf.mxu0
    %v1709 = vadd.f32 0.0, %v1708
    %1710 = vdwg.mxu0
    %v1711 = vadd.f32 %v1382, %v1702
    %v1712 = vadd.f32 %v1383, %v1704
    %v1713 = vadd.f32 %v1384, %v1707
    %v1714 = vadd.f32 %v1385, %v1709
    %s1715 = scalar_lea.vmem %s24, 1
    %v1716 = vld [vmem:[%s1715] sm:$0x1]
    %v1718 = vperm.slane %v1716, 0
    %v1720 = vadd.f32 %v1711, %v1718
    %v1721 = vadd.f32 %v1712, %v1718
    %v1722 = vadd.f32 %v1713, %v1718
    %v1723 = vadd.f32 %v1714, %v1718
    %v1724 = vld [vmem:[%s4] sm:$0x1]
    %v1725 = vld [vmem:[%s5] sm:$0x1]
    %v1726 = vsel %vm93, %v1720, 0.0
    %1727 = vadd.xlane.f32.xlu0 %v1726
    %v1728 = vpop.xlane.xlu0 %1727
    %v1729 = vsel %vm93, %v1721, 0.0
    %1730 = vadd.xlane.f32.xlu0 %v1729
    %v1731 = vpop.xlane.xlu0 %1730
    %v1732 = vsel %vm93, %v1722, 0.0
    %1733 = vadd.xlane.f32.xlu0 %v1732
    %v1734 = vpop.xlane.xlu0 %1733
    %v1735 = vsel %vm93, %v1723, 0.0
    %1736 = vadd.xlane.f32.xlu0 %v1735
    %v1737 = vpop.xlane.xlu0 %1736
    %v1738 = vmul.f32 %v1728, %v112
    %v1739 = vmul.f32 %v1731, %v112
    %v1740 = vmul.f32 %v1734, %v112
    %v1741 = vmul.f32 %v1737, %v112
    %v1742 = vsub.f32 %v1720, %v1738
    %v1743 = vsub.f32 %v1721, %v1739
    %v1744 = vsub.f32 %v1722, %v1740
    %v1745 = vsub.f32 %v1723, %v1741
    %v1746 = vmul.f32 %v1742, %v1742
    %v1747 = vmul.f32 %v1743, %v1743
    %v1748 = vmul.f32 %v1744, %v1744
    %v1749 = vmul.f32 %v1745, %v1745
    %v1750 = vsel %vm93, %v1746, 0.0
    %1751 = vadd.xlane.f32.xlu0 %v1750
    %v1752 = vpop.xlane.xlu0 %1751
    %v1753 = vsel %vm93, %v1747, 0.0
    %1754 = vadd.xlane.f32.xlu0 %v1753
    %v1755 = vpop.xlane.xlu0 %1754
    %v1756 = vsel %vm93, %v1748, 0.0
    %1757 = vadd.xlane.f32.xlu0 %v1756
    %v1758 = vpop.xlane.xlu0 %1757
    %v1759 = vsel %vm93, %v1749, 0.0
    %1760 = vadd.xlane.f32.xlu0 %v1759
    %v1761 = vpop.xlane.xlu0 %1760
    %v1762 = vmul.f32 %v1752, %v112
    %v1763 = vmul.f32 %v1755, %v112
    %v1764 = vmul.f32 %v1758, %v112
    %v1765 = vmul.f32 %v1761, %v112
    %v1766 = vadd.f32 %v1762, 1e-05
    %v1767 = vadd.f32 %v1763, 1e-05
    %v1768 = vadd.f32 %v1764, 1e-05
    %v1769 = vadd.f32 %v1765, 1e-05
    %v1770 = vrsqrt.pop %v1766
    %v1771 = vmul.f32 %v1770, %v1766
    %v1772 = vmul.f32 %v1771, %v1770
    %v1773 = vmul.f32 0.5, %v1772
    %v1774 = vsub.f32 1.5, %v1773
    %v1775 = vmul.f32 %v1770, %v1774
    %vm1776 = vweird.f32 %v1766
    %vm1777 = vweird.f32 %v1770
    %vm1778 = vmor %vm1776, %vm1777
    %v1779 = vsel %vm1778, %v1770, %v1775
    %v1780 = vrsqrt.pop %v1767
    %v1781 = vmul.f32 %v1780, %v1767
    %v1782 = vmul.f32 %v1781, %v1780
    %v1783 = vmul.f32 0.5, %v1782
    %v1784 = vsub.f32 1.5, %v1783
    %v1785 = vmul.f32 %v1780, %v1784
    %vm1786 = vweird.f32 %v1767
    %vm1787 = vweird.f32 %v1780
    %vm1788 = vmor %vm1786, %vm1787
    %v1789 = vsel %vm1788, %v1780, %v1785
    %v1790 = vrsqrt.pop %v1768
    %v1791 = vmul.f32 %v1790, %v1768
    %v1792 = vmul.f32 %v1791, %v1790
    %v1793 = vmul.f32 0.5, %v1792
    %v1794 = vsub.f32 1.5, %v1793
    %v1795 = vmul.f32 %v1790, %v1794
    %vm1796 = vweird.f32 %v1768
    %vm1797 = vweird.f32 %v1790
    %vm1798 = vmor %vm1796, %vm1797
    %v1799 = vsel %vm1798, %v1790, %v1795
    %v1800 = vrsqrt.pop %v1769
    %v1801 = vmul.f32 %v1800, %v1769
    %v1802 = vmul.f32 %v1801, %v1800
    %v1803 = vmul.f32 0.5, %v1802
    %v1804 = vsub.f32 1.5, %v1803
    %v1805 = vmul.f32 %v1800, %v1804
    %vm1806 = vweird.f32 %v1769
    %vm1807 = vweird.f32 %v1800
    %vm1808 = vmor %vm1806, %vm1807
    %v1809 = vsel %vm1808, %v1800, %v1805
    %v1810 = vmul.f32 %v1742, %v1779
    %v1811 = vmul.f32 %v1743, %v1789
    %v1812 = vmul.f32 %v1744, %v1799
    %v1813 = vmul.f32 %v1745, %v1809
    %v1815 = vperm.slane %v1724, 0
    %v1817 = vmul.f32 %v1810, %v1815
    %v1818 = vmul.f32 %v1811, %v1815
    %v1819 = vmul.f32 %v1812, %v1815
    %v1820 = vmul.f32 %v1813, %v1815
    %v1822 = vperm.slane %v1725, 0
    %v1824 = vadd.f32 %v1817, %v1822
    %v1825 = vadd.f32 %v1818, %v1822
    %v1826 = vadd.f32 %v1819, %v1822
    %v1827 = vadd.f32 %v1820, %v1822
    %v1828 = vld [vmem:[%s2] sm:$0xf]
    %v1829 = vpack.c.bf16 %v1828, %v1828
    %v1830 = vpack.c.bf16 %v1825, %v1824
    %v1831 = vpack.c.bf16 %v1827, %v1826
    %v1833 = vsel %vm93, %v1829, 0
    %1835 = vmatpush.bf16.msra.mxu0 0
    %1836 = vmatpush.bf16.msra.mxu0 0
    %1837 = vmatpush.bf16.msra.mxu0 0
    %1838 = vmatpush.bf16.msra.mxu0 0
    %1839 = vmatpush.bf16.msra.mxu0 0
    %1840 = vmatpush.bf16.msra.mxu0 0
    %1841 = vmatpush.bf16.msra.mxu0 %v1831
    %1842 = vmatpush.bf16.msra.mxu0 %v1830
    %1843 = vmatmul.bf16.gmra.mxu0 %v1833
    %v1844 = vpop.f32.mrf.mxu0
    %v1845 = vadd.f32 0.0, %v1844
    %v1846 = vpop.f32.mrf.mxu0
    %1847 = vdwg.mxu0
    %v1848 = vld [vmem:[%s6] sm:$0xf]
    %v1849 = vld [vmem:[%s6 + $0x4] sm:$0xf]
    %v1850 = vld [vmem:[%s6 + $0x8] sm:$0xf]
    %v1851 = vld [vmem:[%s6 + $0xc] sm:$0xf]
    %v1852 = vpack.c.bf16 %v1845, %v1845
    %v1857 = vunpack.c.l.b16 %v1848
    %v1858 = vunpack.c.l.b16 %v1849
    %v1859 = vunpack.c.l.b16 %v1850
    %v1860 = vunpack.c.l.b16 %v1851
    %v1861 = vpack.c.b16 %v1858, %v1857
    %v1862 = vpack.c.b16 %v1860, %v1859
    %v1866 = vsel %vm93, %v1852, 0
    %1868 = vmatpush.bf16.msra.mxu0 0
    %1869 = vmatpush.bf16.msra.mxu0 0
    %1870 = vmatpush.bf16.msra.mxu0 0
    %1871 = vmatpush.bf16.msra.mxu0 0
    %1872 = vmatpush.bf16.msra.mxu0 0
    %1873 = vmatpush.bf16.msra.mxu0 0
    %1874 = vmatpush.bf16.msra.mxu0 %v1862
    %1875 = vmatpush.bf16.msra.mxu0 %v1861
    %1876 = vmatmul.bf16.gmra.mxu0 %v1866
    %v1877 = vpop.f32.mrf.mxu0
    %v1878 = vadd.f32 0.0, %v1877
    %v1879 = vpop.f32.mrf.mxu0
    %1880 = vdwg.mxu0
    %v1881 = vmul.f32 %v1878, %v1878
    %vm1882 = vcmask 257024
    %v1883 = vsel %vm1882, %v1881, 0.0
    %1884 = vadd.xlane.f32.xlu0 %v1883
    %v1885 = vpop.xlane.xlu0 %1884
    %v1886 = vmax.f32 %v1885, 1e-12
    %v1887 = vrsqrt.pop %v1886
    %v1888 = vmul.f32 %v1887, %v1886
    %v1889 = vmul.f32 %v1888, %v1887
    %v1890 = vmul.f32 0.5, %v1889
    %v1891 = vsub.f32 1.5, %v1890
    %v1892 = vmul.f32 %v1887, %v1891
    %vm1893 = vweird.f32 %v1886
    %vm1894 = vweird.f32 %v1887
    %vm1895 = vmor %vm1893, %vm1894
    %v1896 = vsel %vm1895, %v1887, %v1892
    %v1897 = vmul.f32 %v1878, %v1896
    %v1898 = vld [vmem:[%s7] sm:$0xff]
    %v1899 = vld [vmem:[%s7 + $0x8] sm:$0xff]
    %v1900 = vld [vmem:[%s7 + $0x10] sm:$0xff]
    %v1901 = vld [vmem:[%s7 + $0x18] sm:$0xff]
    %v1902 = vld [vmem:[%s8] sm:$0x3]
    %v1903 = vpack.c.bf16 %v1899, %v1898
    %v1904 = vpack.c.bf16 %v1901, %v1900
    %v1905 = vld [vmem:[%s9] sm:$0x1]
    %v1907 = vperm.slane %v1905, 0
    %vm1909 = vcmask 23552
    %v1911 = vsel %vm1909, %v1903, 0
    %v1914 = vsel %vm1909, %v1904, 0
    %vm1916 = vcmask 1040384
    %vm1917 = vcmask 1041408
    %v1918 = vsel %vm1916, 4294967295, 65535
    %v1919 = vsel %vm1917, %v1918, 0
    %v1921 = vand.u32 %v1902, %v1919
    %1923 = vmatpush.bf16.msra.mxu0 0
    %1924 = vmatpush.bf16.msra.mxu0 0
    %1925 = vmatpush.bf16.msra.mxu0 0
    %1926 = vmatpush.bf16.msra.mxu0 0
    %1927 = vmatpush.bf16.msra.mxu0 0
    %1928 = vmatpush.bf16.msra.mxu0 0
    %1929 = vmatpush.bf16.msra.mxu0 0
    %1930 = vmatpush.bf16.msra.mxu0 %v1921
    %1931 = vmatmul.bf16.gmra.mxu0 %v1911
    %v1932 = vpop.f32.mrf.mxu0
    %v1933 = vadd.f32 %v1907, %v1932
    %v1934 = vpop.f32.mrf.mxu0
    %v1935 = vadd.f32 %v1907, %v1934
    %1936 = vmatmul.bf16.gmra.mxu0 %v1914
    %v1937 = vpop.f32.mrf.mxu0
    %v1938 = vadd.f32 %v1907, %v1937
    %v1939 = vpop.f32.mrf.mxu0
    %v1940 = vadd.f32 %v1907, %v1939
    %1941 = vdwg.mxu0
    %v1942 = vmax.f32 %v1933, 0.0
    %v1943 = vmax.f32 %v1935, 0.0
    %v1944 = vmax.f32 %v1938, 0.0
    %v1945 = vmax.f32 %v1940, 0.0
    %v1946 = vld [vmem:[%s10] sm:$0xf]
    %v1947 = vld [vmem:[%s10 + $0x4] sm:$0xf]
    %v1948 = vld [vmem:[%s10 + $0x8] sm:$0xf]
    %v1949 = vld [vmem:[%s10 + $0xc] sm:$0xf]
    %v1950 = vpack.c.bf16 %v1943, %v1942
    %v1951 = vpack.c.bf16 %v1945, %v1944
    %v1952 = vld [vmem:[%s11] sm:$0x1]
    %v1954 = vperm.slane %v1952, 0
    %v1960 = vunpack.c.l.b16 %v1946
    %v1961 = vunpack.c.l.b16 %v1947
    %v1962 = vunpack.c.l.b16 %v1948
    %v1963 = vunpack.c.l.b16 %v1949
    %v1964 = vpack.c.b16 %v1961, %v1960
    %v1965 = vpack.c.b16 %v1963, %v1962
    %v1969 = vsel %vm93, %v1950, 0
    %v1972 = vsel %vm93, %v1951, 0
    %1974 = vmatpush.bf16.msra.mxu0 0
    %1975 = vmatpush.bf16.msra.mxu0 0
    %1976 = vmatpush.bf16.msra.mxu0 0
    %1977 = vmatpush.bf16.msra.mxu0 0
    %1978 = vmatpush.bf16.msra.mxu0 0
    %1979 = vmatpush.bf16.msra.mxu0 0
    %1980 = vmatpush.bf16.msra.mxu0 %v1965
    %1981 = vmatpush.bf16.msra.mxu0 %v1964
    %1982 = vmatmul.bf16.gmra.mxu0 %v1969
    %v1983 = vpop.f32.mrf.mxu0
    %v1984 = vadd.f32 %v1954, %v1983
    %v1985 = vpop.f32.mrf.mxu0
    %v1986 = vadd.f32 %v1954, %v1985
    %1987 = vmatmul.bf16.gmra.mxu0 %v1972
    %v1988 = vpop.f32.mrf.mxu0
    %v1989 = vadd.f32 %v1954, %v1988
    %v1990 = vpop.f32.mrf.mxu0
    %v1991 = vadd.f32 %v1954, %v1990
    %1992 = vdwg.mxu0
    %v1993 = vmax.f32 %v1984, 0.0
    %v1994 = vmax.f32 %v1986, 0.0
    %v1995 = vmax.f32 %v1989, 0.0
    %v1996 = vmax.f32 %v1991, 0.0
    %vm1997 = vcmask 523264
    %v1998 = vsel %vm1997, %v1993, -inf
    %v1999 = vsel %vm1997, %v1994, -inf
    %v2000 = vmax.f32 %v1998, %v1999
    %v2001 = vrot.slane %v2000, 4
    %v2002 = vmax.f32 %v2000, %v2001
    %v2003 = vrot.slane %v2002, 2
    %v2004 = vmax.f32 %v2002, %v2003
    %v2005 = vrot.slane %v2004, 1
    %v2006 = vmax.f32 %v2004, %v2005
    %v2007 = vsel %vm1997, %v1995, -inf
    %v2008 = vsel %vm1997, %v1996, -inf
    %v2009 = vmax.f32 %v2007, %v2008
    %v2010 = vrot.slane %v2009, 4
    %v2011 = vmax.f32 %v2009, %v2010
    %v2012 = vrot.slane %v2011, 2
    %v2013 = vmax.f32 %v2011, %v2012
    %v2014 = vrot.slane %v2013, 1
    %v2015 = vmax.f32 %v2013, %v2014
    %v2016 = vld [vmem:[%s12] sm:$0xf]
    %v2017 = vld [vmem:[%s12 + $0x4] sm:$0xf]
    %v2018 = vld [vmem:[%s12 + $0x8] sm:$0xf]
    %v2019 = vld [vmem:[%s12 + $0xc] sm:$0xf]
    %v2020 = vld [vmem:[%s12 + $0x10] sm:$0xf]
    %v2021 = vld [vmem:[%s12 + $0x14] sm:$0xf]
    %v2022 = vld [vmem:[%s12 + $0x18] sm:$0xf]
    %v2023 = vld [vmem:[%s12 + $0x1c] sm:$0xf]
    %v2024 = vpack.c.bf16 %v2006, %v2006
    %v2025 = vpack.c.bf16 %v2015, %v2015
    %v2028 = vunpack.c.l.b16 %v2024
    %v2029 = vunpack.c.l.b16 %v2025
    %vm2030 = vcmask 1041409
    %v2031 = vsel %vm2030, %v2029, %v2028
    %v2032 = vpack.c.b16 %v2031, %v2031
    %v2041 = vunpack.c.l.b16 %v2016
    %v2042 = vunpack.c.l.b16 %v2017
    %v2043 = vunpack.c.l.b16 %v2018
    %v2044 = vunpack.c.l.b16 %v2019
    %v2045 = vunpack.c.l.b16 %v2020
    %v2046 = vunpack.c.l.b16 %v2021
    %v2047 = vunpack.c.l.b16 %v2022
    %v2048 = vunpack.c.l.b16 %v2023
    %v2049 = vpack.c.b16 %v2042, %v2041
    %v2050 = vpack.c.b16 %v2044, %v2043
    %v2051 = vpack.c.b16 %v2046, %v2045
    %v2052 = vpack.c.b16 %v2048, %v2047
    %v2058 = vsel %vm1997, %v2032, 0
    %2060 = vmatpush.bf16.msra.mxu0 0
    %2061 = vmatpush.bf16.msra.mxu0 0
    %2062 = vmatpush.bf16.msra.mxu0 0
    %2063 = vmatpush.bf16.msra.mxu0 0
    %2064 = vmatpush.bf16.msra.mxu0 %v2052
    %2065 = vmatpush.bf16.msra.mxu0 %v2051
    %2066 = vmatpush.bf16.msra.mxu0 %v2050
    %2067 = vmatpush.bf16.msra.mxu0 %v2049
    %2068 = vmatmul.bf16.gmra.mxu0 %v2058
    %v2069 = vpop.f32.mrf.mxu0
    %v2070 = vadd.f32 0.0, %v2069
    %v2071 = vpop.f32.mrf.mxu0
    %2072 = vdwg.mxu0
    %v2073 = vmul.f32 %v2070, %v2070
    %vm2074 = vcmask 254976
    %v2075 = vsel %vm2074, %v2073, 0.0
    %2076 = vadd.xlane.f32.xlu0 %v2075
    %v2077 = vpop.xlane.xlu0 %2076
    %v2078 = vmax.f32 %v2077, 1e-12
    %v2079 = vrsqrt.pop %v2078
    %v2080 = vmul.f32 %v2079, %v2078
    %v2081 = vmul.f32 %v2080, %v2079
    %v2082 = vmul.f32 0.5, %v2081
    %v2083 = vsub.f32 1.5, %v2082
    %v2084 = vmul.f32 %v2079, %v2083
    %vm2085 = vweird.f32 %v2078
    %vm2086 = vweird.f32 %v2079
    %vm2087 = vmor %vm2085, %vm2086
    %v2088 = vsel %vm2087, %v2079, %v2084
    %v2089 = vmul.f32 %v2070, %v2088
    %v2090 = vpack.c.bf16 %v2089, %v2089
    %v2091 = vpack.c.bf16 %v1897, %v1897
    %v2093 = vsel %vm93, %v2090, 0
    %v2096 = vsel %vm93, %v2091, 0
    %2098 = vmatpush.bf16.xpose.msra.mxu0 0
    %2099 = vmatpush.bf16.xpose.msra.mxu0 0
    %2100 = vmatpush.bf16.xpose.msra.mxu0 0
    %2101 = vmatpush.bf16.xpose.msra.mxu0 0
    %2102 = vmatpush.bf16.xpose.msra.mxu0 0
    %2103 = vmatpush.bf16.xpose.msra.mxu0 0
    %2104 = vmatpush.bf16.xpose.msra.mxu0 0
    %2105 = vmatpush.bf16.xpose.msra.mxu0 %v2096
    %2106 = vmatmul.bf16.gmra.mxu0 %v2093
    %v2107 = vpop.f32.mrf.mxu0
    %v2108 = vadd.f32 0.0, %v2107
    %v2109 = vpop.f32.mrf.mxu0
    %2110 = vdwg.mxu0
    %s2111 = sld [smem:[#allocation2]]
    %v2112 = vstv %s2111
    %v2113 = vmul.f32 %v2112, %v2108
    %vm2114 = vcmask 25600
    %2115 = vst.msk [vmem:[#allocation3] sm:$0x3] %vm2114, %v2113
    // Predicated region
    $region102: #{custom_ulip_forward.1} parent=1 // pred_check
      _
    $region103: #{custom_ulip_forward.1} parent=1 // pred_check_branch
      %2117 = sbr.rel (0) target = $region105
    $region104: #{custom_ulip_forward.1} parent=1 // pred_region
      %2119 = vsyncadd [#allocation4], 0
      %s2121 = sshll.u32 [#allocation3], 4
      %s2122 = int_to_ptr.vmem [resolvable:$true] %s2121
      %s2123 = sshll.u32 %s25, 4
      %s2124 = int_to_ptr.hbm [resolvable:$true] %s2123
      %2126 = dma.vmem_to_hbm [thread:$0]  %s2122, 32, %s2124, [#allocation4]
    $region105: #{custom_ulip_forward.1} parent=1 // pred_fallthru
      _
    // Predicated region
    $region106: #{custom_ulip_forward.1} parent=1 // pred_check
      _
    $region107: #{custom_ulip_forward.1} parent=1 // pred_check_branch
      %2128 = sbr.rel (0) target = $region109
    $region108: #{custom_ulip_forward.1} parent=1 // pred_region
      %2130 = dma.done [#allocation4], 32
    $region109: #{custom_ulip_forward.1} parent=1 // pred_fallthru
      _
    %2131 = vsyncpa [#allocation4], 1

</llo_original>
